<compile_context>
chip_gen: v7x
topology: tpu7x:2x2x1
jax: 0.10.0
libtpu: 0.0.40
codegen_flags: <defaults>
</compile_context>

<pallas_src>
import functools
import math

import jax
import jax.numpy as jnp
from jax.experimental import pallas as pl
from jax.experimental.pallas import tpu as pltpu


_SQRT1_2 = 0.7071067811865476
_LN_EPS = 1e-5  # PyTorch nn.LayerNorm default


def _layer_norm(x, gamma, beta):
    mu = jnp.mean(x, axis=-1, keepdims=True)
    var = jnp.mean(jnp.square(x - mu), axis=-1, keepdims=True)
    return (x - mu) * jax.lax.rsqrt(var + _LN_EPS) * gamma + beta


def _erf(z):
    # Abramowitz & Stegun 7.1.26 (|abs err| <= 1.5e-7 with an exact divide; the
    # EUP approx reciprocal adds ~1e-4 relative error -- fine for inference).
    a1, a2, a3, a4, a5 = 0.254829592, -0.284496736, 1.421413741, -1.453152027, 1.061405429
    p = 0.3275911
    az = jnp.abs(z)
    t = pl.reciprocal(1.0 + p * az, approx=True)   # EUP slot instead of a VPU divide chain
    poly = ((((a5 * t + a4) * t + a3) * t + a2) * t + a1) * t
    e = 1.0 - poly * jnp.exp(-az * az)
    return jnp.where(z >= 0, e, -e)


def _gelu_exact(x):
    # PyTorch nn.GELU() default (erf form), not the tanh approximation.
    return 0.5 * x * (1.0 + _erf(x * _SQRT1_2))


# ----------------------------------------------------------------------------
# Fused SelfEncoderBlock kernel (one grid step == one batch element)
# ----------------------------------------------------------------------------
def self_encoder_block_kernel(x_ref, wqkv_ref, wo_ref,
                              g1_ref, b1_ref, g2_ref, b2_ref,
                              wf1_ref, bf1_ref, wf2_ref, bf2_ref,
                              o_ref, *, num_heads, mxu_dtype):
    N, E = x_ref.shape
    H = num_heads
    D = E // H

    def mm(a, b):
        if mxu_dtype is not None:            # bf16 MXU operands, f32 accumulate
            a = a.astype(mxu_dtype)
            b = b.astype(mxu_dtype)
        return jnp.dot(a, b, preferred_element_type=jnp.float32)

    def bdot(a, b, dims):
        if mxu_dtype is not None:
            a = a.astype(mxu_dtype)
            b = b.astype(mxu_dtype)
        return jax.lax.dot_general(a, b, dims, preferred_element_type=jnp.float32)

    x2 = x_ref[...]                                            # (N, E)

    # ---- norm1 + multi-head self-attention (Q/K/V/proj: bias=False) ----
    xn = _layer_norm(x2, g1_ref[...], b1_ref[...])

    # One fused, full-width QKV matmul (Wq already carries 1/sqrt(emb_size)).
    qkv = mm(xn, wqkv_ref[...])                                # (N, 3E)

    # Head split via major-dim stacking of static lane slices; avoids
    # minor-dim reshapes/transposes that can force VMEM relayout copies.
    def heads(base):                                           # -> (H, N, D)
        return jnp.stack(
            [qkv[:, base + h * D: base + (h + 1) * D] for h in range(H)], axis=0)

    q, k, v = heads(0), heads(E), heads(2 * E)

    # Attention batched over heads (no per-head Python matmul loop).
    energy = bdot(q, k, (((2,), (2,)), ((0,), (0,))))          # (H, N, N)
    m = jnp.max(energy, axis=-1, keepdims=True)
    pexp = jnp.exp(energy - m)
    att = pexp * pl.reciprocal(jnp.sum(pexp, axis=-1, keepdims=True), approx=True)
    ctx = bdot(att, v, (((2,), (1,)), ((0,), (0,))))           # (H, N, D)

    # concat(heads) and ONE full-width output projection + residual 1.
    ctx2 = jnp.concatenate([ctx[h] for h in range(H)], axis=1)  # (N, E)
    y = mm(ctx2, wo_ref[...]) + x2                             # dropout == identity

    # ---- norm2 + feed-forward (Linear+bias -> GELU -> Linear+bias) ----
    yn = _layer_norm(y, g2_ref[...], b2_ref[...])
    h1 = _gelu_exact(mm(yn, wf1_ref[...]) + bf1_ref[...])
    ff = mm(h1, wf2_ref[...]) + bf2_ref[...]

    o_ref[...] = ff + y                                        # residual 2
    # TODO(synk): output last dim stays E=32 (< 128 lanes -> masked partial store);
    # a lane-dense slab would need an in-kernel relayout costing more than it saves
    # at these shapes, so the module-native (tokens, E) layout is kept.


def self_encoder_block(x, p, *, num_heads, use_bf16_matmul=False):
    """One SelfEncoderBlock forward as a fused pallas_call (inference).

    bf16 MXU-operand mode is valid on every TPU generation (v5e's MXU is also
    bf16-native); all elementwise math (LN / softmax / GELU / residuals) stays f32.
    """
    B, N, E = x.shape
    assert E % num_heads == 0
    H = num_heads
    HFF = p['wf1'].shape[1]

    # Fold the 1/sqrt(emb_size) attention scale into Wq and fuse Q|K|V into a
    # single (E, 3E) weight -> one full-width QKV matmul in the kernel.
    inv_scale = 1.0 / math.sqrt(E)                             # scaling = emb_size ** 0.5
    wqkv = jnp.concatenate([p['wq'] * inv_scale, p['wk'], p['wv']], axis=1)   # (E, 3E)
    wo, wf1, wf2 = p['wo'], p['wf1'], p['wf2']

    mxu_dtype = jnp.bfloat16 if use_bf16_matmul else None
    if use_bf16_matmul:
        # Halve weight VMEM footprint / HBM->VMEM DMA bytes on all generations.
        wqkv, wo, wf1, wf2 = (w.astype(jnp.bfloat16) for w in (wqkv, wo, wf1, wf2))

    x2 = x.reshape(B * N, E)   # pre-flatten: no in-kernel (B,N,E)<->(BN,E) round trip

    operands = (x2, wqkv, wo,
                p['ln1_g'], p['ln1_b'], p['ln2_g'], p['ln2_b'],
                wf1, p['bf1'], wf2, p['bf2'])

    # One grid step per batch element; "parallel" shards the grid across the two
    # TensorCores on v7x. Weights use constant index maps -> resident in VMEM.
    tok_spec = pl.BlockSpec((N, E), lambda b: (b, 0))
    in_specs = [tok_spec] + [pl.BlockSpec(a.shape, lambda b: (0, 0)) for a in operands[1:]]

    # VMEM budget from actual weights + per-step activation blocks + in-kernel
    # intermediates (energy HxNxN, h1 NxHFF, ...), clamped below physical VMEM.
    weight_bytes = sum(a.size * a.dtype.itemsize for a in operands[1:])
    block_bytes = 2 * N * E * 4                                  # x tile + out tile (f32)
    inter_bytes = 4 * (3 * N * 3 * E                             # qkv (+ bf16 copies)
                       + 3 * H * N * N                           # energy / exp / att
                       + 8 * N * E                               # q,k,v,ctx,y,yn,...
                       + 3 * N * HFF)                            # h1 + GELU temporaries
    try:
        vmem_cap = int(pltpu.get_tpu_info().vmem_capacity_bytes)
    except Exception:                                            # pragma: no cover
        vmem_cap = 64 * (1 << 20)                                # v7x-safe fallback
    vmem_limit = int(min(max(8 * (1 << 20),
                             2 * weight_bytes + 4 * block_bytes + 2 * inter_bytes),
                         int(0.75 * vmem_cap)))

    kernel = functools.partial(self_encoder_block_kernel,
                               num_heads=num_heads, mxu_dtype=mxu_dtype)
    out = pl.pallas_call(
        kernel,
        grid=(B,),
        out_shape=jax.ShapeDtypeStruct((B * N, E), jnp.float32),
        in_specs=in_specs,
        out_specs=tok_spec,
        compiler_params=pltpu.CompilerParams(
            dimension_semantics=("parallel",),
            vmem_limit_bytes=vmem_limit),
    )(*operands)
    return out.reshape(B, N, E)


# ----------------------------------------------------------------------------
# Pure-JAX reference (mirrors the PyTorch SelfEncoderBlock, eval mode)
# ----------------------------------------------------------------------------
def self_encoder_block_ref(x, p, num_heads):
    B, N, E = x.shape
    D = E // num_heads
    hi = jax.lax.Precision.HIGHEST

    def ln(z, g, b):
        mu = z.mean(-1, keepdims=True)
        var = jnp.square(z - mu).mean(-1, keepdims=True)
        return (z - mu) / jnp.sqrt(var + _LN_EPS) * g + b

    xn = ln(x, p['ln1_g'], p['ln1_b'])
    q = jnp.einsum('bne,ef->bnf', xn, p['wq'], precision=hi)
    k = jnp.einsum('bne,ef->bnf', xn, p['wk'], precision=hi)
    v = jnp.einsum('bne,ef->bnf', xn, p['wv'], precision=hi)
    q = q.reshape(B, N, num_heads, D).transpose(0, 2, 1, 3)
    k = k.reshape(B, N, num_heads, D).transpose(0, 2, 1, 3)
    v = v.reshape(B, N, num_heads, D).transpose(0, 2, 1, 3)
    energy = jnp.einsum('bhqd,bhkd->bhqk', q, k, precision=hi)
    att = jax.nn.softmax(energy / math.sqrt(E), axis=-1)         # scaling = sqrt(emb_size)
    ctx = jnp.einsum('bhqk,bhkd->bhqd', att, v, precision=hi)
    ctx = ctx.transpose(0, 2, 1, 3).reshape(B, N, E)
    y = jnp.einsum('bne,ef->bnf', ctx, p['wo'], precision=hi) + x
    yn = ln(y, p['ln2_g'], p['ln2_b'])
    h1 = jax.nn.gelu(jnp.einsum('bne,ef->bnf', yn, p['wf1'], precision=hi) + p['bf1'],
                     approximate=False)
    return jnp.einsum('bnf,fe->bne', h1, p['wf2'], precision=hi) + p['bf2'] + y


def _dense(key, fan_in, fan_out):
    return jax.random.normal(key, (fan_in, fan_out), jnp.float32) / math.sqrt(fan_in)


# ----------------------------------------------------------------------------
if __name__ == "__main__":
    B, N, E = 2, 8, 32            # batch, tokens, emb_size
    HEADS, EXPANSION = 4, 2
    HFF = EXPANSION * E

    key = jax.random.PRNGKey(0)
    ks = jax.random.split(key, 12)
    x = jax.random.normal(ks[0], (B, N, E), jnp.float32)
    params = {
        'wq': _dense(ks[1], E, E), 'wk': _dense(ks[2], E, E),
        'wv': _dense(ks[3], E, E), 'wo': _dense(ks[4], E, E),
        'ln1_g': 1.0 + 0.1 * jax.random.normal(ks[5], (1, E), jnp.float32),
        'ln1_b': 0.1 * jax.random.normal(ks[6], (1, E), jnp.float32),
        'ln2_g': 1.0 + 0.1 * jax.random.normal(ks[7], (1, E), jnp.float32),
        'ln2_b': 0.1 * jax.random.normal(ks[8], (1, E), jnp.float32),
        'wf1': _dense(ks[9], E, HFF),
        'bf1': 0.1 * jax.random.normal(ks[10], (1, HFF), jnp.float32),
        'wf2': _dense(ks[11], HFF, E),
        'bf2': jnp.zeros((1, E), jnp.float32),
    }

    ref = self_encoder_block_ref(x, params, HEADS)

    # f32 path
    fwd = jax.jit(functools.partial(self_encoder_block, num_heads=HEADS))
    out = jax.block_until_ready(fwd(x, params))
    assert out.shape == (B, N, E)
    assert bool(jnp.allclose(out, ref, rtol=5e-2, atol=5e-2)), (
        "f32 kernel mismatch, max |diff| = "
        f"{float(jnp.max(jnp.abs(out - ref)))}")

    # bf16-MXU-operand path (all TPU generations; f32 accumulate + f32 elementwise)
    fwd_bf16 = jax.jit(functools.partial(self_encoder_block, num_heads=HEADS,
                                         use_bf16_matmul=True))
    out_bf16 = jax.block_until_ready(fwd_bf16(x, params))
    assert bool(jnp.allclose(out_bf16, ref, rtol=2e-1, atol=2e-1)), (
        "bf16 kernel mismatch, max |diff| = "
        f"{float(jnp.max(jnp.abs(out_bf16 - ref)))}")

    print("KERNEL_OK")
</pallas_src>

<mosaic_0001>
module attributes {stable_mosaic.version = 11 : i64} {
  func.func @self_encoder_block_kernel(%arg0: i32, %arg1: memref<8x32xf32, #tpu.memory_space<vmem>>, %arg2: memref<32x96xf32, #tpu.memory_space<vmem>>, %arg3: memref<32x32xf32, #tpu.memory_space<vmem>>, %arg4: memref<1x32xf32, #tpu.memory_space<vmem>>, %arg5: memref<1x32xf32, #tpu.memory_space<vmem>>, %arg6: memref<1x32xf32, #tpu.memory_space<vmem>>, %arg7: memref<1x32xf32, #tpu.memory_space<vmem>>, %arg8: memref<32x64xf32, #tpu.memory_space<vmem>>, %arg9: memref<1x64xf32, #tpu.memory_space<vmem>>, %arg10: memref<64x32xf32, #tpu.memory_space<vmem>>, %arg11: memref<1x32xf32, #tpu.memory_space<vmem>>, %arg12: memref<8x32xf32, #tpu.memory_space<vmem>>) attributes {dimension_semantics = [#tpu.dimension_semantics<parallel>], iteration_bounds = array<i64: 2>, scalar_prefetch = 0 : i64, scratch_operands = 0 : i64, tpu.core_type = #tpu.core_type<tc>, window_params = [{transform_indices = @transform_0, window_bounds = array<i64: 8, 32>}, {pipeline_mode = #tpu.pipeline_mode<synchronous>, transform_indices = @transform_1, window_bounds = array<i64: 32, 96>}, {pipeline_mode = #tpu.pipeline_mode<synchronous>, transform_indices = @transform_2, window_bounds = array<i64: 32, 32>}, {pipeline_mode = #tpu.pipeline_mode<synchronous>, transform_indices = @transform_3, window_bounds = array<i64: 1, 32>}, {pipeline_mode = #tpu.pipeline_mode<synchronous>, transform_indices = @transform_4, window_bounds = array<i64: 1, 32>}, {pipeline_mode = #tpu.pipeline_mode<synchronous>, transform_indices = @transform_5, window_bounds = array<i64: 1, 32>}, {pipeline_mode = #tpu.pipeline_mode<synchronous>, transform_indices = @transform_6, window_bounds = array<i64: 1, 32>}, {pipeline_mode = #tpu.pipeline_mode<synchronous>, transform_indices = @transform_7, window_bounds = array<i64: 32, 64>}, {pipeline_mode = #tpu.pipeline_mode<synchronous>, transform_indices = @transform_8, window_bounds = array<i64: 1, 64>}, {pipeline_mode = #tpu.pipeline_mode<synchronous>, transform_indices = @transform_9, window_bounds = array<i64: 64, 32>}, {pipeline_mode = #tpu.pipeline_mode<synchronous>, transform_indices = @transform_10, window_bounds = array<i64: 1, 32>}, {transform_indices = @transform_11, window_bounds = array<i64: 8, 32>}]} {
    %c0 = arith.constant 0 : index
    %c0_0 = arith.constant 0 : index
    %0 = vector.load %arg1[%c0, %c0_0] : memref<8x32xf32, #tpu.memory_space<vmem>>, vector<8x32xf32>
    %c0_1 = arith.constant 0 : index
    %c0_2 = arith.constant 0 : index
    %1 = vector.load %arg4[%c0_1, %c0_2] : memref<1x32xf32, #tpu.memory_space<vmem>>, vector<1x32xf32>
    %c0_3 = arith.constant 0 : index
    %c0_4 = arith.constant 0 : index
    %2 = vector.load %arg5[%c0_3, %c0_4] : memref<1x32xf32, #tpu.memory_space<vmem>>, vector<1x32xf32>
    %cst = arith.constant dense<0.000000e+00> : vector<8xf32>
    %3 = vector.multi_reduction <add>, %0, %cst [1] : vector<8x32xf32> to vector<8xf32>
    %4 = vector.shape_cast %3 : vector<8xf32> to vector<8x1xf32>
    %cst_5 = arith.constant 3.200000e+01 : f32
    %5 = vector.broadcast %cst_5 : f32 to vector<8x1xf32>
    %6 = arith.divf %4, %5 : vector<8x1xf32>
    %7 = vector.broadcast %6 : vector<8x1xf32> to vector<8x32xf32>
    %8 = arith.subf %0, %7 : vector<8x32xf32>
    %9 = arith.mulf %8, %8 : vector<8x32xf32>
    %cst_6 = arith.constant dense<0.000000e+00> : vector<8xf32>
    %10 = vector.multi_reduction <add>, %9, %cst_6 [1] : vector<8x32xf32> to vector<8xf32>
    %11 = vector.shape_cast %10 : vector<8xf32> to vector<8x1xf32>
    %cst_7 = arith.constant 3.200000e+01 : f32
    %12 = vector.broadcast %cst_7 : f32 to vector<8x1xf32>
    %13 = arith.divf %11, %12 : vector<8x1xf32>
    %14 = vector.broadcast %6 : vector<8x1xf32> to vector<8x32xf32>
    %15 = arith.subf %0, %14 : vector<8x32xf32>
    %cst_8 = arith.constant 9.99999974E-6 : f32
    %16 = vector.broadcast %cst_8 : f32 to vector<8x1xf32>
    %17 = arith.addf %13, %16 : vector<8x1xf32>
    %18 = math.rsqrt %17 : vector<8x1xf32>
    %19 = vector.broadcast %18 : vector<8x1xf32> to vector<8x32xf32>
    %20 = arith.mulf %15, %19 : vector<8x32xf32>
    %21 = vector.broadcast %1 : vector<1x32xf32> to vector<8x32xf32>
    %22 = arith.mulf %20, %21 : vector<8x32xf32>
    %23 = vector.broadcast %2 : vector<1x32xf32> to vector<8x32xf32>
    %24 = arith.addf %22, %23 : vector<8x32xf32>
    %c0_9 = arith.constant 0 : index
    %c0_10 = arith.constant 0 : index
    %25 = vector.load %arg2[%c0_9, %c0_10] : memref<32x96xf32, #tpu.memory_space<vmem>>, vector<32x96xf32>
    %cst_11 = arith.constant dense<0.000000e+00> : vector<8x96xf32>
    %26 = tpu.matmul %24, %25, %cst_11 {dimension_numbers = #tpu.dot_dimension_numbers<[1], [0], [0], [1], [0, 0, 1, 1], [], []>} : vector<8x32xf32>, vector<32x96xf32>, vector<8x96xf32> -> vector<8x96xf32>
    %27 = vector.extract_strided_slice %26 {offsets = [0, 0], sizes = [8, 8], strides = [1, 1]} : vector<8x96xf32> to vector<8x8xf32>
    %28 = vector.extract_strided_slice %26 {offsets = [0, 8], sizes = [8, 8], strides = [1, 1]} : vector<8x96xf32> to vector<8x8xf32>
    %29 = vector.extract_strided_slice %26 {offsets = [0, 16], sizes = [8, 8], strides = [1, 1]} : vector<8x96xf32> to vector<8x8xf32>
    %30 = vector.extract_strided_slice %26 {offsets = [0, 24], sizes = [8, 8], strides = [1, 1]} : vector<8x96xf32> to vector<8x8xf32>
    %31 = vector.shape_cast %27 : vector<8x8xf32> to vector<1x8x8xf32>
    %32 = vector.shape_cast %28 : vector<8x8xf32> to vector<1x8x8xf32>
    %33 = vector.shape_cast %29 : vector<8x8xf32> to vector<1x8x8xf32>
    %34 = vector.shape_cast %30 : vector<8x8xf32> to vector<1x8x8xf32>
    %35 = tpu.concatenate %31, %32, %33, %34 in 0 : vector<1x8x8xf32>, vector<1x8x8xf32>, vector<1x8x8xf32>, vector<1x8x8xf32> -> vector<4x8x8xf32>
    %36 = vector.extract_strided_slice %26 {offsets = [0, 32], sizes = [8, 8], strides = [1, 1]} : vector<8x96xf32> to vector<8x8xf32>
    %37 = vector.extract_strided_slice %26 {offsets = [0, 40], sizes = [8, 8], strides = [1, 1]} : vector<8x96xf32> to vector<8x8xf32>
    %38 = vector.extract_strided_slice %26 {offsets = [0, 48], sizes = [8, 8], strides = [1, 1]} : vector<8x96xf32> to vector<8x8xf32>
    %39 = vector.extract_strided_slice %26 {offsets = [0, 56], sizes = [8, 8], strides = [1, 1]} : vector<8x96xf32> to vector<8x8xf32>
    %40 = vector.shape_cast %36 : vector<8x8xf32> to vector<1x8x8xf32>
    %41 = vector.shape_cast %37 : vector<8x8xf32> to vector<1x8x8xf32>
    %42 = vector.shape_cast %38 : vector<8x8xf32> to vector<1x8x8xf32>
    %43 = vector.shape_cast %39 : vector<8x8xf32> to vector<1x8x8xf32>
    %44 = tpu.concatenate %40, %41, %42, %43 in 0 : vector<1x8x8xf32>, vector<1x8x8xf32>, vector<1x8x8xf32>, vector<1x8x8xf32> -> vector<4x8x8xf32>
    %45 = vector.extract_strided_slice %26 {offsets = [0, 64], sizes = [8, 8], strides = [1, 1]} : vector<8x96xf32> to vector<8x8xf32>
    %46 = vector.extract_strided_slice %26 {offsets = [0, 72], sizes = [8, 8], strides = [1, 1]} : vector<8x96xf32> to vector<8x8xf32>
    %47 = vector.extract_strided_slice %26 {offsets = [0, 80], sizes = [8, 8], strides = [1, 1]} : vector<8x96xf32> to vector<8x8xf32>
    %48 = vector.extract_strided_slice %26 {offsets = [0, 88], sizes = [8, 8], strides = [1, 1]} : vector<8x96xf32> to vector<8x8xf32>
    %49 = vector.shape_cast %45 : vector<8x8xf32> to vector<1x8x8xf32>
    %50 = vector.shape_cast %46 : vector<8x8xf32> to vector<1x8x8xf32>
    %51 = vector.shape_cast %47 : vector<8x8xf32> to vector<1x8x8xf32>
    %52 = vector.shape_cast %48 : vector<8x8xf32> to vector<1x8x8xf32>
    %53 = tpu.concatenate %49, %50, %51, %52 in 0 : vector<1x8x8xf32>, vector<1x8x8xf32>, vector<1x8x8xf32>, vector<1x8x8xf32> -> vector<4x8x8xf32>
    %cst_12 = arith.constant dense<0.000000e+00> : vector<4x8x8xf32>
    %54 = tpu.matmul %35, %44, %cst_12 {dimension_numbers = #tpu.dot_dimension_numbers<[2], [2], [1], [1], [0, 0, 0, 1, 1, 1], [0], [0]>} : vector<4x8x8xf32>, vector<4x8x8xf32>, vector<4x8x8xf32> -> vector<4x8x8xf32>
    %cst_13 = arith.constant dense<0xFF800000> : vector<4x8xf32>
    %55 = vector.multi_reduction <maximumf>, %54, %cst_13 [2] : vector<4x8x8xf32> to vector<4x8xf32>
    %56 = vector.shape_cast %55 : vector<4x8xf32> to vector<4x8x1xf32>
    %57 = vector.broadcast %56 : vector<4x8x1xf32> to vector<4x8x8xf32>
    %58 = arith.subf %54, %57 : vector<4x8x8xf32>
    %59 = math.exp %58 : vector<4x8x8xf32>
    %cst_14 = arith.constant dense<0.000000e+00> : vector<4x8xf32>
    %60 = vector.multi_reduction <add>, %59, %cst_14 [2] : vector<4x8x8xf32> to vector<4x8xf32>
    %61 = vector.shape_cast %60 : vector<4x8xf32> to vector<4x8x1xf32>
    %62 = tpu.reciprocal %61 {approx = true} : vector<4x8x1xf32> -> vector<4x8x1xf32>
    %63 = vector.broadcast %62 : vector<4x8x1xf32> to vector<4x8x8xf32>
    %64 = arith.mulf %59, %63 : vector<4x8x8xf32>
    %cst_15 = arith.constant dense<0.000000e+00> : vector<4x8x8xf32>
    %65 = tpu.matmul %64, %53, %cst_15 {dimension_numbers = #tpu.dot_dimension_numbers<[2], [1], [1], [2], [0, 0, 0, 1, 1, 2], [0], [0]>} : vector<4x8x8xf32>, vector<4x8x8xf32>, vector<4x8x8xf32> -> vector<4x8x8xf32>
    %66 = vector.extract_strided_slice %65 {offsets = [0, 0, 0], sizes = [1, 8, 8], strides = [1, 1, 1]} : vector<4x8x8xf32> to vector<1x8x8xf32>
    %67 = vector.shape_cast %66 : vector<1x8x8xf32> to vector<8x8xf32>
    %68 = vector.extract_strided_slice %65 {offsets = [1, 0, 0], sizes = [1, 8, 8], strides = [1, 1, 1]} : vector<4x8x8xf32> to vector<1x8x8xf32>
    %69 = vector.shape_cast %68 : vector<1x8x8xf32> to vector<8x8xf32>
    %70 = vector.extract_strided_slice %65 {offsets = [2, 0, 0], sizes = [1, 8, 8], strides = [1, 1, 1]} : vector<4x8x8xf32> to vector<1x8x8xf32>
    %71 = vector.shape_cast %70 : vector<1x8x8xf32> to vector<8x8xf32>
    %72 = vector.extract_strided_slice %65 {offsets = [3, 0, 0], sizes = [1, 8, 8], strides = [1, 1, 1]} : vector<4x8x8xf32> to vector<1x8x8xf32>
    %73 = vector.shape_cast %72 : vector<1x8x8xf32> to vector<8x8xf32>
    %74 = tpu.concatenate %67, %69, %71, %73 in 1 : vector<8x8xf32>, vector<8x8xf32>, vector<8x8xf32>, vector<8x8xf32> -> vector<8x32xf32>
    %c0_16 = arith.constant 0 : index
    %c0_17 = arith.constant 0 : index
    %75 = vector.load %arg3[%c0_16, %c0_17] : memref<32x32xf32, #tpu.memory_space<vmem>>, vector<32x32xf32>
    %cst_18 = arith.constant dense<0.000000e+00> : vector<8x32xf32>
    %76 = tpu.matmul %74, %75, %cst_18 {dimension_numbers = #tpu.dot_dimension_numbers<[1], [0], [0], [1], [0, 0, 1, 1], [], []>} : vector<8x32xf32>, vector<32x32xf32>, vector<8x32xf32> -> vector<8x32xf32>
    %77 = arith.addf %76, %0 : vector<8x32xf32>
    %c0_19 = arith.constant 0 : index
    %c0_20 = arith.constant 0 : index
    %78 = vector.load %arg6[%c0_19, %c0_20] : memref<1x32xf32, #tpu.memory_space<vmem>>, vector<1x32xf32>
    %c0_21 = arith.constant 0 : index
    %c0_22 = arith.constant 0 : index
    %79 = vector.load %arg7[%c0_21, %c0_22] : memref<1x32xf32, #tpu.memory_space<vmem>>, vector<1x32xf32>
    %cst_23 = arith.constant dense<0.000000e+00> : vector<8xf32>
    %80 = vector.multi_reduction <add>, %77, %cst_23 [1] : vector<8x32xf32> to vector<8xf32>
    %81 = vector.shape_cast %80 : vector<8xf32> to vector<8x1xf32>
    %cst_24 = arith.constant 3.200000e+01 : f32
    %82 = vector.broadcast %cst_24 : f32 to vector<8x1xf32>
    %83 = arith.divf %81, %82 : vector<8x1xf32>
    %84 = vector.broadcast %83 : vector<8x1xf32> to vector<8x32xf32>
    %85 = arith.subf %77, %84 : vector<8x32xf32>
    %86 = arith.mulf %85, %85 : vector<8x32xf32>
    %cst_25 = arith.constant dense<0.000000e+00> : vector<8xf32>
    %87 = vector.multi_reduction <add>, %86, %cst_25 [1] : vector<8x32xf32> to vector<8xf32>
    %88 = vector.shape_cast %87 : vector<8xf32> to vector<8x1xf32>
    %cst_26 = arith.constant 3.200000e+01 : f32
    %89 = vector.broadcast %cst_26 : f32 to vector<8x1xf32>
    %90 = arith.divf %88, %89 : vector<8x1xf32>
    %91 = vector.broadcast %83 : vector<8x1xf32> to vector<8x32xf32>
    %92 = arith.subf %77, %91 : vector<8x32xf32>
    %cst_27 = arith.constant 9.99999974E-6 : f32
    %93 = vector.broadcast %cst_27 : f32 to vector<8x1xf32>
    %94 = arith.addf %90, %93 : vector<8x1xf32>
    %95 = math.rsqrt %94 : vector<8x1xf32>
    %96 = vector.broadcast %95 : vector<8x1xf32> to vector<8x32xf32>
    %97 = arith.mulf %92, %96 : vector<8x32xf32>
    %98 = vector.broadcast %78 : vector<1x32xf32> to vector<8x32xf32>
    %99 = arith.mulf %97, %98 : vector<8x32xf32>
    %100 = vector.broadcast %79 : vector<1x32xf32> to vector<8x32xf32>
    %101 = arith.addf %99, %100 : vector<8x32xf32>
    %c0_28 = arith.constant 0 : index
    %c0_29 = arith.constant 0 : index
    %102 = vector.load %arg8[%c0_28, %c0_29] : memref<32x64xf32, #tpu.memory_space<vmem>>, vector<32x64xf32>
    %cst_30 = arith.constant dense<0.000000e+00> : vector<8x64xf32>
    %103 = tpu.matmul %101, %102, %cst_30 {dimension_numbers = #tpu.dot_dimension_numbers<[1], [0], [0], [1], [0, 0, 1, 1], [], []>} : vector<8x32xf32>, vector<32x64xf32>, vector<8x64xf32> -> vector<8x64xf32>
    %c0_31 = arith.constant 0 : index
    %c0_32 = arith.constant 0 : index
    %104 = vector.load %arg9[%c0_31, %c0_32] : memref<1x64xf32, #tpu.memory_space<vmem>>, vector<1x64xf32>
    %105 = vector.broadcast %104 : vector<1x64xf32> to vector<8x64xf32>
    %106 = arith.addf %103, %105 : vector<8x64xf32>
    %cst_33 = arith.constant 5.000000e-01 : f32
    %107 = vector.broadcast %cst_33 : f32 to vector<8x64xf32>
    %108 = arith.mulf %107, %106 : vector<8x64xf32>
    %cst_34 = arith.constant 0.707106769 : f32
    %109 = vector.broadcast %cst_34 : f32 to vector<8x64xf32>
    %110 = arith.mulf %106, %109 : vector<8x64xf32>
    %111 = math.absf %110 : vector<8x64xf32>
    %cst_35 = arith.constant 0.327591091 : f32
    %112 = vector.broadcast %cst_35 : f32 to vector<8x64xf32>
    %113 = arith.mulf %112, %111 : vector<8x64xf32>
    %cst_36 = arith.constant 1.000000e+00 : f32
    %114 = vector.broadcast %cst_36 : f32 to vector<8x64xf32>
    %115 = arith.addf %114, %113 : vector<8x64xf32>
    %116 = tpu.reciprocal %115 {approx = true} : vector<8x64xf32> -> vector<8x64xf32>
    %cst_37 = arith.constant 1.06140542 : f32
    %117 = vector.broadcast %cst_37 : f32 to vector<8x64xf32>
    %118 = arith.mulf %117, %116 : vector<8x64xf32>
    %cst_38 = arith.constant -1.45315206 : f32
    %119 = vector.broadcast %cst_38 : f32 to vector<8x64xf32>
    %120 = arith.addf %118, %119 : vector<8x64xf32>
    %121 = arith.mulf %120, %116 : vector<8x64xf32>
    %cst_39 = arith.constant 1.42141378 : f32
    %122 = vector.broadcast %cst_39 : f32 to vector<8x64xf32>
    %123 = arith.addf %121, %122 : vector<8x64xf32>
    %124 = arith.mulf %123, %116 : vector<8x64xf32>
    %cst_40 = arith.constant -0.284496725 : f32
    %125 = vector.broadcast %cst_40 : f32 to vector<8x64xf32>
    %126 = arith.addf %124, %125 : vector<8x64xf32>
    %127 = arith.mulf %126, %116 : vector<8x64xf32>
    %cst_41 = arith.constant 0.254829586 : f32
    %128 = vector.broadcast %cst_41 : f32 to vector<8x64xf32>
    %129 = arith.addf %127, %128 : vector<8x64xf32>
    %130 = arith.mulf %129, %116 : vector<8x64xf32>
    %cst_42 = arith.constant 0.000000e+00 : f32
    %131 = vector.broadcast %cst_42 : f32 to vector<8x64xf32>
    %132 = arith.subf %131, %111 : vector<8x64xf32>
    %133 = arith.mulf %132, %111 : vector<8x64xf32>
    %134 = math.exp %133 : vector<8x64xf32>
    %135 = arith.mulf %130, %134 : vector<8x64xf32>
    %cst_43 = arith.constant 1.000000e+00 : f32
    %136 = vector.broadcast %cst_43 : f32 to vector<8x64xf32>
    %137 = arith.subf %136, %135 : vector<8x64xf32>
    %cst_44 = arith.constant 0.000000e+00 : f32
    %138 = vector.broadcast %cst_44 : f32 to vector<8x64xf32>
    %139 = arith.cmpf oge, %110, %138 : vector<8x64xf32>
    %cst_45 = arith.constant 0.000000e+00 : f32
    %140 = vector.broadcast %cst_45 : f32 to vector<8x64xf32>
    %141 = arith.subf %140, %137 : vector<8x64xf32>
    %142 = arith.select %139, %137, %141 : vector<8x64xi1>, vector<8x64xf32>
    %cst_46 = arith.constant 1.000000e+00 : f32
    %143 = vector.broadcast %cst_46 : f32 to vector<8x64xf32>
    %144 = arith.addf %143, %142 : vector<8x64xf32>
    %145 = arith.mulf %108, %144 : vector<8x64xf32>
    %c0_47 = arith.constant 0 : index
    %c0_48 = arith.constant 0 : index
    %146 = vector.load %arg10[%c0_47, %c0_48] : memref<64x32xf32, #tpu.memory_space<vmem>>, vector<64x32xf32>
    %cst_49 = arith.constant dense<0.000000e+00> : vector<8x32xf32>
    %147 = tpu.matmul %145, %146, %cst_49 {dimension_numbers = #tpu.dot_dimension_numbers<[1], [0], [0], [1], [0, 0, 1, 1], [], []>} : vector<8x64xf32>, vector<64x32xf32>, vector<8x32xf32> -> vector<8x32xf32>
    %c0_50 = arith.constant 0 : index
    %c0_51 = arith.constant 0 : index
    %148 = vector.load %arg11[%c0_50, %c0_51] : memref<1x32xf32, #tpu.memory_space<vmem>>, vector<1x32xf32>
    %149 = vector.broadcast %148 : vector<1x32xf32> to vector<8x32xf32>
    %150 = arith.addf %147, %149 : vector<8x32xf32>
    %151 = arith.addf %150, %77 : vector<8x32xf32>
    %c0_52 = arith.constant 0 : index
    %c0_53 = arith.constant 0 : index
    %152 = vector.load %arg12[%c0_52, %c0_53] : memref<8x32xf32, #tpu.memory_space<vmem>>, vector<8x32xf32>
    tpu.vector_store %arg12[%c0_52, %c0_53], %151 {strides = array<i32>} : memref<8x32xf32, #tpu.memory_space<vmem>>, vector<8x32xf32>,
    return
  }
  func.func @transform_0(%arg0: i32) -> (i32, i32) {
    %c0_i32 = arith.constant 0 : i32
    %c0_i32_0 = arith.constant 0 : i32
    return %arg0, %c0_i32 : i32, i32
  }
  func.func @transform_1(%arg0: i32) -> (i32, i32) {
    %c0_i32 = arith.constant 0 : i32
    %c0_i32_0 = arith.constant 0 : i32
    %c0_i32_1 = arith.constant 0 : i32
    return %c0_i32, %c0_i32_0 : i32, i32
  }
  func.func @transform_2(%arg0: i32) -> (i32, i32) {
    %c0_i32 = arith.constant 0 : i32
    %c0_i32_0 = arith.constant 0 : i32
    %c0_i32_1 = arith.constant 0 : i32
    return %c0_i32, %c0_i32_0 : i32, i32
  }
  func.func @transform_3(%arg0: i32) -> (i32, i32) {
    %c0_i32 = arith.constant 0 : i32
    %c0_i32_0 = arith.constant 0 : i32
    %c0_i32_1 = arith.constant 0 : i32
    return %c0_i32, %c0_i32_0 : i32, i32
  }
  func.func @transform_4(%arg0: i32) -> (i32, i32) {
    %c0_i32 = arith.constant 0 : i32
    %c0_i32_0 = arith.constant 0 : i32
    %c0_i32_1 = arith.constant 0 : i32
    return %c0_i32, %c0_i32_0 : i32, i32
  }
  func.func @transform_5(%arg0: i32) -> (i32, i32) {
    %c0_i32 = arith.constant 0 : i32
    %c0_i32_0 = arith.constant 0 : i32
    %c0_i32_1 = arith.constant 0 : i32
    return %c0_i32, %c0_i32_0 : i32, i32
  }
  func.func @transform_6(%arg0: i32) -> (i32, i32) {
    %c0_i32 = arith.constant 0 : i32
    %c0_i32_0 = arith.constant 0 : i32
    %c0_i32_1 = arith.constant 0 : i32
    return %c0_i32, %c0_i32_0 : i32, i32
  }
  func.func @transform_7(%arg0: i32) -> (i32, i32) {
    %c0_i32 = arith.constant 0 : i32
    %c0_i32_0 = arith.constant 0 : i32
    %c0_i32_1 = arith.constant 0 : i32
    return %c0_i32, %c0_i32_0 : i32, i32
  }
  func.func @transform_8(%arg0: i32) -> (i32, i32) {
    %c0_i32 = arith.constant 0 : i32
    %c0_i32_0 = arith.constant 0 : i32
    %c0_i32_1 = arith.constant 0 : i32
    return %c0_i32, %c0_i32_0 : i32, i32
  }
  func.func @transform_9(%arg0: i32) -> (i32, i32) {
    %c0_i32 = arith.constant 0 : i32
    %c0_i32_0 = arith.constant 0 : i32
    %c0_i32_1 = arith.constant 0 : i32
    return %c0_i32, %c0_i32_0 : i32, i32
  }
  func.func @transform_10(%arg0: i32) -> (i32, i32) {
    %c0_i32 = arith.constant 0 : i32
    %c0_i32_0 = arith.constant 0 : i32
    %c0_i32_1 = arith.constant 0 : i32
    return %c0_i32, %c0_i32_0 : i32, i32
  }
  func.func @transform_11(%arg0: i32) -> (i32, i32) {
    %c0_i32 = arith.constant 0 : i32
    %c0_i32_0 = arith.constant 0 : i32
    return %arg0, %c0_i32 : i32, i32
  }
}

</mosaic_0001>

<llo_original>
// kernel: self_encoder_block.1
$region0: #{self_encoder_block.1}
  #allocation0 [shape = 'u32[]', space=smem, size = 0x4, offset = 0x4, fixed_abs, tag = 'smem constant byte address 0x4 - core index']
  #allocation1 [shape = 'u32[144,128]{1,0:T(1,128)}', space=vmem, size = 0x12000, scoped, tag = 'internal scratch']
  %s0 = inlined_call_operand.vmem [shape: f32[16,32], index: 0, kind: input, shape index: {}]
  %s1 = inlined_call_operand.vmem [shape: f32[32,96], index: 1, kind: input, shape index: {}]
  %s2 = inlined_call_operand.vmem [shape: f32[32,32], index: 2, kind: input, shape index: {}]
  %s3 = inlined_call_operand.vmem [shape: f32[1,32], index: 3, kind: input, shape index: {}]
  %s4 = inlined_call_operand.vmem [shape: f32[1,32], index: 4, kind: input, shape index: {}]
  %s5 = inlined_call_operand.vmem [shape: f32[1,32], index: 5, kind: input, shape index: {}]
  %s6 = inlined_call_operand.vmem [shape: f32[1,32], index: 6, kind: input, shape index: {}]
  %s7 = inlined_call_operand.vmem [shape: f32[32,64], index: 7, kind: input, shape index: {}]
  %s8 = inlined_call_operand.vmem [shape: f32[1,64], index: 8, kind: input, shape index: {}]
  %s9 = inlined_call_operand.vmem [shape: f32[64,32], index: 9, kind: input, shape index: {}]
  %s10 = inlined_call_operand.vmem [shape: f32[1,32], index: 10, kind: input, shape index: {}]
  %s11 = inlined_call_operand.hbm [shape: f32[16,32], index: 11, kind: output, shape index: {}]
  %s12 = sld [smem:[#allocation0]]
  $region77: #{self_encoder_block.1} parent=0
    _
  %s14 = ssub.s32 1, %s12
  %s15 = scalar_select 0, %s14, %s12
  $region1: #{self_encoder_block.1} parent=0
    #allocation2 [shape = 'u8[8192]{0}', space=vmem, size = 0x2000, scoped, tag = 'output window, operand 0']
    #allocation3 [shape = 's32[2]{0}', space=sflag, size = 0x8, scoped, tag = 'scoped memory for self_encoder_block.1']
    %16 = vsyncpa [#allocation3], 0
    %s17 = scalar_lea.sflag [#allocation3], 1
    %18 = vsyncpa %s17, 0
    loop: start=0, step=1, limit=4
    $region2: #{self_encoder_block.1} parent=1 // loop_pre_header
      _
    $region3: #{self_encoder_block.1} parent=1 // loop_header
      %s20 = sphi 0, %s24
      %p21 = scmp.ge.s32.totalorder %s20, 4
      %s30 = sphi 0, %s32
      %s33 = sphi 0, %s30
      %s34 = sphi 0, %s33
      %s50 = sphi 0, %s34
      %s54 = sphi 0, %s54
      %s56 = sphi 0, %s54
      %s57 = sphi 0, %s56
      %s71 = sphi 0, %s57
      %s75 = sphi 0, %s75
      %s77 = sphi 0, %s75
      %s78 = sphi 0, %s77
      %s92 = sphi 0, %s78
      %s96 = sphi 0, %s96
      %s98 = sphi 0, %s96
      %s99 = sphi 0, %s98
      %s113 = sphi 0, %s99
      %s117 = sphi 0, %s117
      %s119 = sphi 0, %s117
      %s120 = sphi 0, %s119
      %s134 = sphi 0, %s120
      %s138 = sphi 0, %s138
      %s140 = sphi 0, %s138
      %s141 = sphi 0, %s140
      %s155 = sphi 0, %s141
      %s159 = sphi 0, %s159
      %s161 = sphi 0, %s159
      %s162 = sphi 0, %s161
      %s176 = sphi 0, %s162
      %s180 = sphi 0, %s180
      %s182 = sphi 0, %s180
      %s183 = sphi 0, %s182
      %s197 = sphi 0, %s183
      %s201 = sphi 0, %s201
      %s203 = sphi 0, %s201
      %s204 = sphi 0, %s203
      %s218 = sphi 0, %s204
      %s222 = sphi 0, %s222
      %s224 = sphi 0, %s222
      %s225 = sphi 0, %s224
      %s239 = sphi 0, %s225
      %s243 = sphi 0, %s243
      %s245 = sphi 0, %s243
      %s246 = sphi 0, %s245
      %s260 = sphi 0, %s246
      %s266 = sphi 0, %s268
      %s269 = sphi 0, %s266
      %s270 = sphi 0, %s269
      %s286 = sphi 0, %s270
    $region4: #{self_encoder_block.1} parent=1 // loop_header_branch
      %23 = sbr.rel (%p21) target = $region8
    $region5: #{self_encoder_block.1} parent=1 // loop_body
      %s25 = ssub.s32 %s20, 1
      %s26 = ssub.s32 %s20, 2
      %s27 = sadd.s32 %s20, 1
      %s28 = ssub.s32 %s20, %s27
      %p29 = scmp.eq.s32.totalorder %s28, 0
      %s31 = sadd.s32 %s30, 1
      %s32 = scalar_select %p29, %s30, %s31
      %p35 = pneg %p29
      %p36 = scmp.eq.s32.totalorder %s20, 1
      %p37 = por %p35, %p36
      %p38 = scmp.ne.s32.totalorder %s30, %s33
      %p39 = scmp.eq.s32.totalorder %s20, 0
      %p40 = por %p38, %p39
      %p41 = scmp.ne.s32.totalorder %s30, %s33
      %p42 = scmp.eq.s32.totalorder %s25, 1
      %p43 = por %p41, %p42
      %p44 = scmp.ne.s32.totalorder %s33, %s34
      %p45 = scmp.eq.s32.totalorder %s25, 0
      %p46 = por %p44, %p45
      %p47 = scmp.ne.s32.totalorder %s33, %s34
      %p48 = scmp.eq.s32.totalorder %s26, 1
      %p49 = por %p47, %p48
      %p51 = scmp.ne.s32.totalorder %s34, %s50
      %p52 = scmp.eq.s32.totalorder %s26, 0
      %p53 = por %p51, %p52
      %s55 = sadd.s32 %s54, 1
      %p58 = scmp.eq.s32.totalorder %s20, 1
      %p59 = scmp.ne.s32.totalorder %s54, %s56
      %p60 = scmp.eq.s32.totalorder %s20, 0
      %p61 = por %p59, %p60
      %p62 = scmp.ne.s32.totalorder %s54, %s56
      %p63 = scmp.eq.s32.totalorder %s25, 1
      %p64 = por %p62, %p63
      %p65 = scmp.ne.s32.totalorder %s56, %s57
      %p66 = scmp.eq.s32.totalorder %s25, 0
      %p67 = por %p65, %p66
      %p68 = scmp.ne.s32.totalorder %s56, %s57
      %p69 = scmp.eq.s32.totalorder %s26, 1
      %p70 = por %p68, %p69
      %p72 = scmp.ne.s32.totalorder %s57, %s71
      %p73 = scmp.eq.s32.totalorder %s26, 0
      %p74 = por %p72, %p73
      %s76 = sadd.s32 %s75, 1
      %p79 = scmp.eq.s32.totalorder %s20, 1
      %p80 = scmp.ne.s32.totalorder %s75, %s77
      %p81 = scmp.eq.s32.totalorder %s20, 0
      %p82 = por %p80, %p81
      %p83 = scmp.ne.s32.totalorder %s75, %s77
      %p84 = scmp.eq.s32.totalorder %s25, 1
      %p85 = por %p83, %p84
      %p86 = scmp.ne.s32.totalorder %s77, %s78
      %p87 = scmp.eq.s32.totalorder %s25, 0
      %p88 = por %p86, %p87
      %p89 = scmp.ne.s32.totalorder %s77, %s78
      %p90 = scmp.eq.s32.totalorder %s26, 1
      %p91 = por %p89, %p90
      %p93 = scmp.ne.s32.totalorder %s78, %s92
      %p94 = scmp.eq.s32.totalorder %s26, 0
      %p95 = por %p93, %p94
      %s97 = sadd.s32 %s96, 1
      %p100 = scmp.eq.s32.totalorder %s20, 1
      %p101 = scmp.ne.s32.totalorder %s96, %s98
      %p102 = scmp.eq.s32.totalorder %s20, 0
      %p103 = por %p101, %p102
      %p104 = scmp.ne.s32.totalorder %s96, %s98
      %p105 = scmp.eq.s32.totalorder %s25, 1
      %p106 = por %p104, %p105
      %p107 = scmp.ne.s32.totalorder %s98, %s99
      %p108 = scmp.eq.s32.totalorder %s25, 0
      %p109 = por %p107, %p108
      %p110 = scmp.ne.s32.totalorder %s98, %s99
      %p111 = scmp.eq.s32.totalorder %s26, 1
      %p112 = por %p110, %p111
      %p114 = scmp.ne.s32.totalorder %s99, %s113
      %p115 = scmp.eq.s32.totalorder %s26, 0
      %p116 = por %p114, %p115
      %s118 = sadd.s32 %s117, 1
      %p121 = scmp.eq.s32.totalorder %s20, 1
      %p122 = scmp.ne.s32.totalorder %s117, %s119
      %p123 = scmp.eq.s32.totalorder %s20, 0
      %p124 = por %p122, %p123
      %p125 = scmp.ne.s32.totalorder %s117, %s119
      %p126 = scmp.eq.s32.totalorder %s25, 1
      %p127 = por %p125, %p126
      %p128 = scmp.ne.s32.totalorder %s119, %s120
      %p129 = scmp.eq.s32.totalorder %s25, 0
      %p130 = por %p128, %p129
      %p131 = scmp.ne.s32.totalorder %s119, %s120
      %p132 = scmp.eq.s32.totalorder %s26, 1
      %p133 = por %p131, %p132
      %p135 = scmp.ne.s32.totalorder %s120, %s134
      %p136 = scmp.eq.s32.totalorder %s26, 0
      %p137 = por %p135, %p136
      %s139 = sadd.s32 %s138, 1
      %p142 = scmp.eq.s32.totalorder %s20, 1
      %p143 = scmp.ne.s32.totalorder %s138, %s140
      %p144 = scmp.eq.s32.totalorder %s20, 0
      %p145 = por %p143, %p144
      %p146 = scmp.ne.s32.totalorder %s138, %s140
      %p147 = scmp.eq.s32.totalorder %s25, 1
      %p148 = por %p146, %p147
      %p149 = scmp.ne.s32.totalorder %s140, %s141
      %p150 = scmp.eq.s32.totalorder %s25, 0
      %p151 = por %p149, %p150
      %p152 = scmp.ne.s32.totalorder %s140, %s141
      %p153 = scmp.eq.s32.totalorder %s26, 1
      %p154 = por %p152, %p153
      %p156 = scmp.ne.s32.totalorder %s141, %s155
      %p157 = scmp.eq.s32.totalorder %s26, 0
      %p158 = por %p156, %p157
      %s160 = sadd.s32 %s159, 1
      %p163 = scmp.eq.s32.totalorder %s20, 1
      %p164 = scmp.ne.s32.totalorder %s159, %s161
      %p165 = scmp.eq.s32.totalorder %s20, 0
      %p166 = por %p164, %p165
      %p167 = scmp.ne.s32.totalorder %s159, %s161
      %p168 = scmp.eq.s32.totalorder %s25, 1
      %p169 = por %p167, %p168
      %p170 = scmp.ne.s32.totalorder %s161, %s162
      %p171 = scmp.eq.s32.totalorder %s25, 0
      %p172 = por %p170, %p171
      %p173 = scmp.ne.s32.totalorder %s161, %s162
      %p174 = scmp.eq.s32.totalorder %s26, 1
      %p175 = por %p173, %p174
      %p177 = scmp.ne.s32.totalorder %s162, %s176
      %p178 = scmp.eq.s32.totalorder %s26, 0
      %p179 = por %p177, %p178
      %s181 = sadd.s32 %s180, 1
      %p184 = scmp.eq.s32.totalorder %s20, 1
      %p185 = scmp.ne.s32.totalorder %s180, %s182
      %p186 = scmp.eq.s32.totalorder %s20, 0
      %p187 = por %p185, %p186
      %p188 = scmp.ne.s32.totalorder %s180, %s182
      %p189 = scmp.eq.s32.totalorder %s25, 1
      %p190 = por %p188, %p189
      %p191 = scmp.ne.s32.totalorder %s182, %s183
      %p192 = scmp.eq.s32.totalorder %s25, 0
      %p193 = por %p191, %p192
      %p194 = scmp.ne.s32.totalorder %s182, %s183
      %p195 = scmp.eq.s32.totalorder %s26, 1
      %p196 = por %p194, %p195
      %p198 = scmp.ne.s32.totalorder %s183, %s197
      %p199 = scmp.eq.s32.totalorder %s26, 0
      %p200 = por %p198, %p199
      %s202 = sadd.s32 %s201, 1
      %p205 = scmp.eq.s32.totalorder %s20, 1
      %p206 = scmp.ne.s32.totalorder %s201, %s203
      %p207 = scmp.eq.s32.totalorder %s20, 0
      %p208 = por %p206, %p207
      %p209 = scmp.ne.s32.totalorder %s201, %s203
      %p210 = scmp.eq.s32.totalorder %s25, 1
      %p211 = por %p209, %p210
      %p212 = scmp.ne.s32.totalorder %s203, %s204
      %p213 = scmp.eq.s32.totalorder %s25, 0
      %p214 = por %p212, %p213
      %p215 = scmp.ne.s32.totalorder %s203, %s204
      %p216 = scmp.eq.s32.totalorder %s26, 1
      %p217 = por %p215, %p216
      %p219 = scmp.ne.s32.totalorder %s204, %s218
      %p220 = scmp.eq.s32.totalorder %s26, 0
      %p221 = por %p219, %p220
      %s223 = sadd.s32 %s222, 1
      %p226 = scmp.eq.s32.totalorder %s20, 1
      %p227 = scmp.ne.s32.totalorder %s222, %s224
      %p228 = scmp.eq.s32.totalorder %s20, 0
      %p229 = por %p227, %p228
      %p230 = scmp.ne.s32.totalorder %s222, %s224
      %p231 = scmp.eq.s32.totalorder %s25, 1
      %p232 = por %p230, %p231
      %p233 = scmp.ne.s32.totalorder %s224, %s225
      %p234 = scmp.eq.s32.totalorder %s25, 0
      %p235 = por %p233, %p234
      %p236 = scmp.ne.s32.totalorder %s224, %s225
      %p237 = scmp.eq.s32.totalorder %s26, 1
      %p238 = por %p236, %p237
      %p240 = scmp.ne.s32.totalorder %s225, %s239
      %p241 = scmp.eq.s32.totalorder %s26, 0
      %p242 = por %p240, %p241
      %s244 = sadd.s32 %s243, 1
      %p247 = scmp.eq.s32.totalorder %s20, 1
      %p248 = scmp.ne.s32.totalorder %s243, %s245
      %p249 = scmp.eq.s32.totalorder %s20, 0
      %p250 = por %p248, %p249
      %p251 = scmp.ne.s32.totalorder %s243, %s245
      %p252 = scmp.eq.s32.totalorder %s25, 1
      %p253 = por %p251, %p252
      %p254 = scmp.ne.s32.totalorder %s245, %s246
      %p255 = scmp.eq.s32.totalorder %s25, 0
      %p256 = por %p254, %p255
      %p257 = scmp.ne.s32.totalorder %s245, %s246
      %p258 = scmp.eq.s32.totalorder %s26, 1
      %p259 = por %p257, %p258
      %p261 = scmp.ne.s32.totalorder %s246, %s260
      %p262 = scmp.eq.s32.totalorder %s26, 0
      %p263 = por %p261, %p262
      %s264 = ssub.s32 %s20, %s27
      %p265 = scmp.eq.s32.totalorder %s264, 0
      %s267 = sadd.s32 %s266, 1
      %s268 = scalar_select %p265, %s266, %s267
      %p271 = pneg %p265
      %p272 = scmp.eq.s32.totalorder %s20, 1
      %p273 = por %p271, %p272
      %p274 = scmp.ne.s32.totalorder %s266, %s269
      %p275 = scmp.eq.s32.totalorder %s20, 0
      %p276 = por %p274, %p275
      %p277 = scmp.ne.s32.totalorder %s266, %s269
      %p278 = scmp.eq.s32.totalorder %s25, 1
      %p279 = por %p277, %p278
      %p280 = scmp.ne.s32.totalorder %s269, %s270
      %p281 = scmp.eq.s32.totalorder %s25, 0
      %p282 = por %p280, %p281
      %p283 = scmp.ne.s32.totalorder %s269, %s270
      %p284 = scmp.eq.s32.totalorder %s26, 1
      %p285 = por %p283, %p284
      %p287 = scmp.ne.s32.totalorder %s270, %s286
      %p288 = scmp.eq.s32.totalorder %s26, 0
      %p289 = por %p287, %p288
      %p290 = scmp.le.s32.totalorder 1, %s20
      %p291 = scmp.lt.s32.totalorder %s20, 3
      %p292 = pnand %p290, %p291
      %p293 = pneg %p292
      // Predicated region
      $region9: #{self_encoder_block.1} parent=5 // pred_check
        _
      $region10: #{self_encoder_block.1} parent=5 // pred_check_branch
        %295 = sbr.rel (%p292) target = $region12
      $region11: #{self_encoder_block.1} parent=5 // pred_region
        %s296 = ssub.s32 %s20, 1
        // Predicated region
        $region13: #{self_encoder_block.1} parent=11 // pred_check
          %p297 = pneg %p67
        $region14: #{self_encoder_block.1} parent=11 // pred_check_branch
          %299 = sbr.rel (%p297) target = $region16
        $region15: #{self_encoder_block.1} parent=11 // pred_region
          _
        $region16: #{self_encoder_block.1} parent=11 // pred_fallthru
          _
        // Predicated region
        $region17: #{self_encoder_block.1} parent=11 // pred_check
          %p300 = pneg %p88
        $region18: #{self_encoder_block.1} parent=11 // pred_check_branch
          %302 = sbr.rel (%p300) target = $region20
        $region19: #{self_encoder_block.1} parent=11 // pred_region
          _
        $region20: #{self_encoder_block.1} parent=11 // pred_fallthru
          _
        // Predicated region
        $region21: #{self_encoder_block.1} parent=11 // pred_check
          %p303 = pneg %p109
        $region22: #{self_encoder_block.1} parent=11 // pred_check_branch
          %305 = sbr.rel (%p303) target = $region24
        $region23: #{self_encoder_block.1} parent=11 // pred_region
          _
        $region24: #{self_encoder_block.1} parent=11 // pred_fallthru
          _
        // Predicated region
        $region25: #{self_encoder_block.1} parent=11 // pred_check
          %p306 = pneg %p130
        $region26: #{self_encoder_block.1} parent=11 // pred_check_branch
          %308 = sbr.rel (%p306) target = $region28
        $region27: #{self_encoder_block.1} parent=11 // pred_region
          _
        $region28: #{self_encoder_block.1} parent=11 // pred_fallthru
          _
        // Predicated region
        $region29: #{self_encoder_block.1} parent=11 // pred_check
          %p309 = pneg %p151
        $region30: #{self_encoder_block.1} parent=11 // pred_check_branch
          %311 = sbr.rel (%p309) target = $region32
        $region31: #{self_encoder_block.1} parent=11 // pred_region
          _
        $region32: #{self_encoder_block.1} parent=11 // pred_fallthru
          _
        // Predicated region
        $region33: #{self_encoder_block.1} parent=11 // pred_check
          %p312 = pneg %p172
        $region34: #{self_encoder_block.1} parent=11 // pred_check_branch
          %314 = sbr.rel (%p312) target = $region36
        $region35: #{self_encoder_block.1} parent=11 // pred_region
          _
        $region36: #{self_encoder_block.1} parent=11 // pred_fallthru
          _
        // Predicated region
        $region37: #{self_encoder_block.1} parent=11 // pred_check
          %p315 = pneg %p193
        $region38: #{self_encoder_block.1} parent=11 // pred_check_branch
          %317 = sbr.rel (%p315) target = $region40
        $region39: #{self_encoder_block.1} parent=11 // pred_region
          _
        $region40: #{self_encoder_block.1} parent=11 // pred_fallthru
          _
        // Predicated region
        $region41: #{self_encoder_block.1} parent=11 // pred_check
          %p318 = pneg %p214
        $region42: #{self_encoder_block.1} parent=11 // pred_check_branch
          %320 = sbr.rel (%p318) target = $region44
        $region43: #{self_encoder_block.1} parent=11 // pred_region
          _
        $region44: #{self_encoder_block.1} parent=11 // pred_fallthru
          _
        // Predicated region
        $region45: #{self_encoder_block.1} parent=11 // pred_check
          %p321 = pneg %p235
        $region46: #{self_encoder_block.1} parent=11 // pred_check_branch
          %323 = sbr.rel (%p321) target = $region48
        $region47: #{self_encoder_block.1} parent=11 // pred_region
          _
        $region48: #{self_encoder_block.1} parent=11 // pred_fallthru
          _
        // Predicated region
        $region49: #{self_encoder_block.1} parent=11 // pred_check
          %p324 = pneg %p256
        $region50: #{self_encoder_block.1} parent=11 // pred_check_branch
          %326 = sbr.rel (%p324) target = $region52
        $region51: #{self_encoder_block.1} parent=11 // pred_region
          _
        $region52: #{self_encoder_block.1} parent=11 // pred_fallthru
          _
      $region12: #{self_encoder_block.1} parent=5 // pred_fallthru
        _
      %p327 = scmp.lt.s32.totalorder %s20, 2
      // Predicated region
      $region53: #{self_encoder_block.1} parent=5 // pred_check
        %p328 = pneg %p327
      $region54: #{self_encoder_block.1} parent=5 // pred_check_branch
        %330 = sbr.rel (%p328) target = $region56
      $region55: #{self_encoder_block.1} parent=5 // pred_region
        // Predicated region
        $region57: #{self_encoder_block.1} parent=55 // pred_check
          %p331 = pneg %p40
        $region58: #{self_encoder_block.1} parent=55 // pred_check_branch
          %333 = sbr.rel (%p331) target = $region60
        $region59: #{self_encoder_block.1} parent=55 // pred_region
          %p334 = scmp.lt.s32.totalorder %s20, 1
          %s335 = scalar_select %p334, %s20, 1
          %s336 = smul.addr %s335, 8
          %s337 = scalar_lea.vmem %s0, %s336
        $region60: #{self_encoder_block.1} parent=55 // pred_fallthru
          _
      $region56: #{self_encoder_block.1} parent=5 // pred_fallthru
        _
      %p338 = scmp.le.s32.totalorder 1, %s20
      %p339 = scmp.lt.s32.totalorder %s20, 3
      %p340 = pnand %p338, %p339
      %p341 = pneg %p340
      // Predicated region
      $region61: #{self_encoder_block.1} parent=5 // pred_check
        _
      $region62: #{self_encoder_block.1} parent=5 // pred_check_branch
        %343 = sbr.rel (%p340) target = $region64
      $region63: #{self_encoder_block.1} parent=5 // pred_region
        %s344 = ssub.s32 %s20, 1
        %p345 = scmp.lt.s32.totalorder %s25, 1
        %s346 = scalar_select %p345, %s25, 1
        %s347 = smul.addr %s346, 8
        %s348 = scalar_lea.vmem %s0, %s347
        %p349 = pneg %p46
        %p350 = pneg %p43
        %p351 = pneg %p67
        %p352 = pneg %p64
        %p353 = pneg %p88
        %p354 = pneg %p85
        %p355 = pneg %p109
        %p356 = pneg %p106
        %p357 = pneg %p130
        %p358 = pneg %p127
        %p359 = pneg %p151
        %p360 = pneg %p148
        %p361 = pneg %p172
        %p362 = pneg %p169
        %p363 = pneg %p193
        %p364 = pneg %p190
        %p365 = pneg %p214
        %p366 = pneg %p211
        %p367 = pneg %p235
        %p368 = pneg %p232
        %p369 = pneg %p256
        %p370 = pneg %p253
        %p371 = pneg %p282
        %p372 = pneg %p279
        %s373 = sand.u32 %s269, 1
        %s374 = scalar_lea.sflag [#allocation3], %s373
        %s375 = sand.u32 %s269, 1
        %s376 = smul.addr %s375, 8
        %s377 = scalar_lea.vmem [#allocation2], %s376
        %p378 = scmp.lt.s32.totalorder %s25, 1
        %s379 = scalar_select %p378, %s25, 1
        %s380 = smul.addr %s379, 8
        %s381 = scalar_lea.vmem %s0, %s380
        %v382 = vld [vmem:[%s381] sm:$0xff]
        %v383 = vld [vmem:[%s3] sm:$0x1]
        %v384 = vld [vmem:[%s4] sm:$0x1]
        %vm385 = vcmask 261120
        %v386 = vsel %vm385, %v382, 0.0
        %387 = vadd.xlane.f32.xlu0 %v386
        %v388 = vpop.xlane.xlu0 %387
        %v389 = vrcp.pop 32.0
        %v390 = vmul.f32 %v388, %v389
        %v391 = vsub.f32 %v382, %v390
        %v392 = vmul.f32 %v391, %v391
        %v393 = vsel %vm385, %v392, 0.0
        %394 = vadd.xlane.f32.xlu0 %v393
        %v395 = vpop.xlane.xlu0 %394
        %v396 = vmul.f32 %v395, %v389
        %v397 = vadd.f32 %v396, 1e-05
        %v398 = vrsqrt.pop %v397
        %v399 = vmul.f32 %v391, %v398
        %v401 = vlaneseq
        %v402 = vshrl.u32 %v401, 7
        %v403 = vsub.s32 0, %v402
        %v404 = vrot.slane %v383, %v403
        %v406 = vmul.f32 %v399, %v404
        %v408 = vlaneseq
        %v409 = vshrl.u32 %v408, 7
        %v410 = vsub.s32 0, %v409
        %v411 = vrot.slane %v384, %v410
        %v413 = vadd.f32 %v406, %v411
        %v414 = vld [vmem:[%s1] sm:$0xff]
        %v415 = vld [vmem:[%s1 + $0x8] sm:$0xff]
        %v416 = vld [vmem:[%s1 + $0x10] sm:$0xff]
        %v417 = vld [vmem:[%s1 + $0x18] sm:$0xff]
        %v419 = vsel %vm385, %v413, 0
        %421 = vmatprep.subr.mxu0 0.0
        %422 = vmatpush1.msra.mxu0 %v414
        %423 = vmatprep.subr.mxu0 0.0
        %424 = vmatpush1.msra.mxu0 %v415
        %425 = vmatprep.subr.mxu0 0.0
        %426 = vmatpush1.msra.mxu0 %v416
        %427 = vmatprep.subr.mxu0 0.0
        %428 = vmatpush1.msra.mxu0 %v417
        %429 = vmatprep.subr.mxu0 0.0
        %430 = vmatpush1.msra.mxu0 0.0
        %431 = vmatprep.subr.mxu0 0.0
        %432 = vmatpush1.msra.mxu0 0.0
        %433 = vmatprep.subr.mxu0 0.0
        %434 = vmatpush1.msra.mxu0 0.0
        %435 = vmatprep.subr.mxu0 0.0
        %436 = vmatpush1.msra.mxu0 0.0
        %437 = vmatprep.subr.mxu0 0.0
        %438 = vmatpush1.msra.mxu0 0.0
        %439 = vmatprep.subr.mxu0 0.0
        %440 = vmatpush1.msra.mxu0 0.0
        %441 = vmatprep.subr.mxu0 0.0
        %442 = vmatpush1.msra.mxu0 0.0
        %443 = vmatprep.subr.mxu0 0.0
        %444 = vmatpush1.msra.mxu0 0.0
        %445 = vmatprep.subr.mxu0 0.0
        %446 = vmatpush1.msra.mxu0 0.0
        %447 = vmatprep.subr.mxu0 0.0
        %448 = vmatpush1.msra.mxu0 0.0
        %449 = vmatprep.subr.mxu0 0.0
        %450 = vmatpush1.msra.mxu0 0.0
        %451 = vmatprep.subr.mxu0 0.0
        %452 = vmatpush1.msra.mxu0 0.0
        %453 = vmatprep.subr.mxu0 0.0
        %454 = vmatpush1.msra.mxu0 0.0
        %455 = vmatprep.subr.mxu0 0.0
        %456 = vmatpush1.msra.mxu0 0.0
        %457 = vmatprep.subr.mxu0 0.0
        %458 = vmatpush1.msra.mxu0 0.0
        %459 = vmatprep.subr.mxu0 0.0
        %460 = vmatpush1.msra.mxu0 0.0
        %461 = vmatprep.subr.mxu0 0.0
        %462 = vmatpush1.msra.mxu0 0.0
        %463 = vmatprep.subr.mxu0 0.0
        %464 = vmatpush1.msra.mxu0 0.0
        %465 = vmatprep.subr.mxu0 0.0
        %466 = vmatpush1.msra.mxu0 0.0
        %467 = vmatprep.subr.mxu0 0.0
        %468 = vmatpush1.msra.mxu0 0.0
        %469 = vmatprep.subr.mxu0 0.0
        %470 = vmatpush1.msra.mxu0 0.0
        %471 = vmatprep.subr.mxu0 0.0
        %472 = vmatpush1.msra.mxu0 0.0
        %473 = vmatprep.subr.mxu0 0.0
        %474 = vmatpush1.msra.mxu0 0.0
        %475 = vmatprep.subr.mxu0 0.0
        %476 = vmatpush1.msra.mxu0 0.0
        %477 = vmatprep.subr.mxu0 0.0
        %478 = vmatpush1.msra.mxu0 0.0
        %479 = vmatprep.subr.mxu0 0.0
        %480 = vmatpush1.msra.mxu0 0.0
        %481 = vmatprep.subr.mxu0 0.0
        %482 = vmatpush1.msra.mxu0 0.0
        %483 = vmatprep.subr.mxu0 0.0
        %484 = vmatpush1.msra.mxu0 0.0
        %485 = vmatprep.mubr.f32.mxu0 0.0
        %486 = vmatmul.mubr.f32.gmra.mrb[0].mxu0 %v419
        %v487 = vpop.f32.mrb[0].mxu0
        %v488 = vadd.f32 0.0, %v487
        %v489 = vpop.f32.mrb[0].mxu0
        %490 = vdwg.mxu0
        %492 = vrot.lane.b32.xlu0 %v488, 120
        %v493 = vpop.permute.xlu0 %492
        %494 = vrot.lane.b32.xlu0 %v488, 112
        %v495 = vpop.permute.xlu0 %494
        %496 = vrot.lane.b32.xlu0 %v488, 104
        %v497 = vpop.permute.xlu0 %496
        %498 = vrot.lane.b32.xlu0 %v488, 96
        %v499 = vpop.permute.xlu0 %498
        %vm500 = vcmask 64512
        %v501 = vsel %vm500, %v488, 0
        %v503 = vsel %vm500, %v499, 0
        %505 = vmatprep.subr.mxu0 0.0
        %506 = vmatpush1.xpose.msra.mxu0 %v503
        %507 = vmatprep.subr.mxu0 0.0
        %508 = vmatpush1.xpose.msra.mxu0 0.0
        %509 = vmatprep.subr.mxu0 0.0
        %510 = vmatpush1.xpose.msra.mxu0 0.0
        %511 = vmatprep.subr.mxu0 0.0
        %512 = vmatpush1.xpose.msra.mxu0 0.0
        %513 = vmatprep.subr.mxu0 0.0
        %514 = vmatpush1.xpose.msra.mxu0 0.0
        %515 = vmatprep.subr.mxu0 0.0
        %516 = vmatpush1.xpose.msra.mxu0 0.0
        %517 = vmatprep.subr.mxu0 0.0
        %518 = vmatpush1.xpose.msra.mxu0 0.0
        %519 = vmatprep.subr.mxu0 0.0
        %520 = vmatpush1.xpose.msra.mxu0 0.0
        %521 = vmatprep.subr.mxu0 0.0
        %522 = vmatpush1.xpose.msra.mxu0 0.0
        %523 = vmatprep.subr.mxu0 0.0
        %524 = vmatpush1.xpose.msra.mxu0 0.0
        %525 = vmatprep.subr.mxu0 0.0
        %526 = vmatpush1.xpose.msra.mxu0 0.0
        %527 = vmatprep.subr.mxu0 0.0
        %528 = vmatpush1.xpose.msra.mxu0 0.0
        %529 = vmatprep.subr.mxu0 0.0
        %530 = vmatpush1.xpose.msra.mxu0 0.0
        %531 = vmatprep.subr.mxu0 0.0
        %532 = vmatpush1.xpose.msra.mxu0 0.0
        %533 = vmatprep.subr.mxu0 0.0
        %534 = vmatpush1.xpose.msra.mxu0 0.0
        %535 = vmatprep.subr.mxu0 0.0
        %536 = vmatpush1.xpose.msra.mxu0 0.0
        %537 = vmatprep.subr.mxu0 0.0
        %538 = vmatpush1.xpose.msra.mxu0 0.0
        %539 = vmatprep.subr.mxu0 0.0
        %540 = vmatpush1.xpose.msra.mxu0 0.0
        %541 = vmatprep.subr.mxu0 0.0
        %542 = vmatpush1.xpose.msra.mxu0 0.0
        %543 = vmatprep.subr.mxu0 0.0
        %544 = vmatpush1.xpose.msra.mxu0 0.0
        %545 = vmatprep.subr.mxu0 0.0
        %546 = vmatpush1.xpose.msra.mxu0 0.0
        %547 = vmatprep.subr.mxu0 0.0
        %548 = vmatpush1.xpose.msra.mxu0 0.0
        %549 = vmatprep.subr.mxu0 0.0
        %550 = vmatpush1.xpose.msra.mxu0 0.0
        %551 = vmatprep.subr.mxu0 0.0
        %552 = vmatpush1.xpose.msra.mxu0 0.0
        %553 = vmatprep.subr.mxu0 0.0
        %554 = vmatpush1.xpose.msra.mxu0 0.0
        %555 = vmatprep.subr.mxu0 0.0
        %556 = vmatpush1.xpose.msra.mxu0 0.0
        %557 = vmatprep.subr.mxu0 0.0
        %558 = vmatpush1.xpose.msra.mxu0 0.0
        %559 = vmatprep.subr.mxu0 0.0
        %560 = vmatpush1.xpose.msra.mxu0 0.0
        %561 = vmatprep.subr.mxu0 0.0
        %562 = vmatpush1.xpose.msra.mxu0 0.0
        %563 = vmatprep.subr.mxu0 0.0
        %564 = vmatpush1.xpose.msra.mxu0 0.0
        %565 = vmatprep.subr.mxu0 0.0
        %566 = vmatpush1.xpose.msra.mxu0 0.0
        %567 = vmatprep.subr.mxu0 0.0
        %568 = vmatpush1.xpose.msra.mxu0 0.0
        %569 = vmatprep.mubr.f32.mxu0 0.0
        %570 = vmatmul.mubr.f32.gmra.mrb[0].mxu0 %v501
        %v571 = vpop.f32.mrb[0].mxu0
        %v572 = vadd.f32 0.0, %v571
        %v573 = vpop.f32.mrb[0].mxu0
        %574 = vdwg.mxu0
        %575 = vrot.lane.b32.xlu0 %v493, 96
        %v576 = vpop.permute.xlu0 %575
        %v577 = vsel %vm500, %v493, 0
        %v579 = vsel %vm500, %v576, 0
        %581 = vmatprep.subr.mxu0 0.0
        %582 = vmatpush1.xpose.msra.mxu0 %v579
        %583 = vmatprep.subr.mxu0 0.0
        %584 = vmatpush1.xpose.msra.mxu0 0.0
        %585 = vmatprep.subr.mxu0 0.0
        %586 = vmatpush1.xpose.msra.mxu0 0.0
        %587 = vmatprep.subr.mxu0 0.0
        %588 = vmatpush1.xpose.msra.mxu0 0.0
        %589 = vmatprep.subr.mxu0 0.0
        %590 = vmatpush1.xpose.msra.mxu0 0.0
        %591 = vmatprep.subr.mxu0 0.0
        %592 = vmatpush1.xpose.msra.mxu0 0.0
        %593 = vmatprep.subr.mxu0 0.0
        %594 = vmatpush1.xpose.msra.mxu0 0.0
        %595 = vmatprep.subr.mxu0 0.0
        %596 = vmatpush1.xpose.msra.mxu0 0.0
        %597 = vmatprep.subr.mxu0 0.0
        %598 = vmatpush1.xpose.msra.mxu0 0.0
        %599 = vmatprep.subr.mxu0 0.0
        %600 = vmatpush1.xpose.msra.mxu0 0.0
        %601 = vmatprep.subr.mxu0 0.0
        %602 = vmatpush1.xpose.msra.mxu0 0.0
        %603 = vmatprep.subr.mxu0 0.0
        %604 = vmatpush1.xpose.msra.mxu0 0.0
        %605 = vmatprep.subr.mxu0 0.0
        %606 = vmatpush1.xpose.msra.mxu0 0.0
        %607 = vmatprep.subr.mxu0 0.0
        %608 = vmatpush1.xpose.msra.mxu0 0.0
        %609 = vmatprep.subr.mxu0 0.0
        %610 = vmatpush1.xpose.msra.mxu0 0.0
        %611 = vmatprep.subr.mxu0 0.0
        %612 = vmatpush1.xpose.msra.mxu0 0.0
        %613 = vmatprep.subr.mxu0 0.0
        %614 = vmatpush1.xpose.msra.mxu0 0.0
        %615 = vmatprep.subr.mxu0 0.0
        %616 = vmatpush1.xpose.msra.mxu0 0.0
        %617 = vmatprep.subr.mxu0 0.0
        %618 = vmatpush1.xpose.msra.mxu0 0.0
        %619 = vmatprep.subr.mxu0 0.0
        %620 = vmatpush1.xpose.msra.mxu0 0.0
        %621 = vmatprep.subr.mxu0 0.0
        %622 = vmatpush1.xpose.msra.mxu0 0.0
        %623 = vmatprep.subr.mxu0 0.0
        %624 = vmatpush1.xpose.msra.mxu0 0.0
        %625 = vmatprep.subr.mxu0 0.0
        %626 = vmatpush1.xpose.msra.mxu0 0.0
        %627 = vmatprep.subr.mxu0 0.0
        %628 = vmatpush1.xpose.msra.mxu0 0.0
        %629 = vmatprep.subr.mxu0 0.0
        %630 = vmatpush1.xpose.msra.mxu0 0.0
        %631 = vmatprep.subr.mxu0 0.0
        %632 = vmatpush1.xpose.msra.mxu0 0.0
        %633 = vmatprep.subr.mxu0 0.0
        %634 = vmatpush1.xpose.msra.mxu0 0.0
        %635 = vmatprep.subr.mxu0 0.0
        %636 = vmatpush1.xpose.msra.mxu0 0.0
        %637 = vmatprep.subr.mxu0 0.0
        %638 = vmatpush1.xpose.msra.mxu0 0.0
        %639 = vmatprep.subr.mxu0 0.0
        %640 = vmatpush1.xpose.msra.mxu0 0.0
        %641 = vmatprep.subr.mxu0 0.0
        %642 = vmatpush1.xpose.msra.mxu0 0.0
        %643 = vmatprep.subr.mxu0 0.0
        %644 = vmatpush1.xpose.msra.mxu0 0.0
        %645 = vmatprep.mubr.f32.mxu0 0.0
        %646 = vmatmul.mubr.f32.gmra.mrb[0].mxu0 %v577
        %v647 = vpop.f32.mrb[0].mxu0
        %v648 = vadd.f32 0.0, %v647
        %v649 = vpop.f32.mrb[0].mxu0
        %650 = vdwg.mxu0
        %651 = vrot.lane.b32.xlu0 %v495, 96
        %v652 = vpop.permute.xlu0 %651
        %v653 = vsel %vm500, %v495, 0
        %v655 = vsel %vm500, %v652, 0
        %657 = vmatprep.subr.mxu0 0.0
        %658 = vmatpush1.xpose.msra.mxu0 %v655
        %659 = vmatprep.subr.mxu0 0.0
        %660 = vmatpush1.xpose.msra.mxu0 0.0
        %661 = vmatprep.subr.mxu0 0.0
        %662 = vmatpush1.xpose.msra.mxu0 0.0
        %663 = vmatprep.subr.mxu0 0.0
        %664 = vmatpush1.xpose.msra.mxu0 0.0
        %665 = vmatprep.subr.mxu0 0.0
        %666 = vmatpush1.xpose.msra.mxu0 0.0
        %667 = vmatprep.subr.mxu0 0.0
        %668 = vmatpush1.xpose.msra.mxu0 0.0
        %669 = vmatprep.subr.mxu0 0.0
        %670 = vmatpush1.xpose.msra.mxu0 0.0
        %671 = vmatprep.subr.mxu0 0.0
        %672 = vmatpush1.xpose.msra.mxu0 0.0
        %673 = vmatprep.subr.mxu0 0.0
        %674 = vmatpush1.xpose.msra.mxu0 0.0
        %675 = vmatprep.subr.mxu0 0.0
        %676 = vmatpush1.xpose.msra.mxu0 0.0
        %677 = vmatprep.subr.mxu0 0.0
        %678 = vmatpush1.xpose.msra.mxu0 0.0
        %679 = vmatprep.subr.mxu0 0.0
        %680 = vmatpush1.xpose.msra.mxu0 0.0
        %681 = vmatprep.subr.mxu0 0.0
        %682 = vmatpush1.xpose.msra.mxu0 0.0
        %683 = vmatprep.subr.mxu0 0.0
        %684 = vmatpush1.xpose.msra.mxu0 0.0
        %685 = vmatprep.subr.mxu0 0.0
        %686 = vmatpush1.xpose.msra.mxu0 0.0
        %687 = vmatprep.subr.mxu0 0.0
        %688 = vmatpush1.xpose.msra.mxu0 0.0
        %689 = vmatprep.subr.mxu0 0.0
        %690 = vmatpush1.xpose.msra.mxu0 0.0
        %691 = vmatprep.subr.mxu0 0.0
        %692 = vmatpush1.xpose.msra.mxu0 0.0
        %693 = vmatprep.subr.mxu0 0.0
        %694 = vmatpush1.xpose.msra.mxu0 0.0
        %695 = vmatprep.subr.mxu0 0.0
        %696 = vmatpush1.xpose.msra.mxu0 0.0
        %697 = vmatprep.subr.mxu0 0.0
        %698 = vmatpush1.xpose.msra.mxu0 0.0
        %699 = vmatprep.subr.mxu0 0.0
        %700 = vmatpush1.xpose.msra.mxu0 0.0
        %701 = vmatprep.subr.mxu0 0.0
        %702 = vmatpush1.xpose.msra.mxu0 0.0
        %703 = vmatprep.subr.mxu0 0.0
        %704 = vmatpush1.xpose.msra.mxu0 0.0
        %705 = vmatprep.subr.mxu0 0.0
        %706 = vmatpush1.xpose.msra.mxu0 0.0
        %707 = vmatprep.subr.mxu0 0.0
        %708 = vmatpush1.xpose.msra.mxu0 0.0
        %709 = vmatprep.subr.mxu0 0.0
        %710 = vmatpush1.xpose.msra.mxu0 0.0
        %711 = vmatprep.subr.mxu0 0.0
        %712 = vmatpush1.xpose.msra.mxu0 0.0
        %713 = vmatprep.subr.mxu0 0.0
        %714 = vmatpush1.xpose.msra.mxu0 0.0
        %715 = vmatprep.subr.mxu0 0.0
        %716 = vmatpush1.xpose.msra.mxu0 0.0
        %717 = vmatprep.subr.mxu0 0.0
        %718 = vmatpush1.xpose.msra.mxu0 0.0
        %719 = vmatprep.subr.mxu0 0.0
        %720 = vmatpush1.xpose.msra.mxu0 0.0
        %721 = vmatprep.mubr.f32.mxu0 0.0
        %722 = vmatmul.mubr.f32.gmra.mrb[0].mxu0 %v653
        %v723 = vpop.f32.mrb[0].mxu0
        %v724 = vadd.f32 0.0, %v723
        %v725 = vpop.f32.mrb[0].mxu0
        %726 = vdwg.mxu0
        %727 = vrot.lane.b32.xlu0 %v497, 96
        %v728 = vpop.permute.xlu0 %727
        %v729 = vsel %vm500, %v497, 0
        %v731 = vsel %vm500, %v728, 0
        %733 = vmatprep.subr.mxu0 0.0
        %734 = vmatpush1.xpose.msra.mxu0 %v731
        %735 = vmatprep.subr.mxu0 0.0
        %736 = vmatpush1.xpose.msra.mxu0 0.0
        %737 = vmatprep.subr.mxu0 0.0
        %738 = vmatpush1.xpose.msra.mxu0 0.0
        %739 = vmatprep.subr.mxu0 0.0
        %740 = vmatpush1.xpose.msra.mxu0 0.0
        %741 = vmatprep.subr.mxu0 0.0
        %742 = vmatpush1.xpose.msra.mxu0 0.0
        %743 = vmatprep.subr.mxu0 0.0
        %744 = vmatpush1.xpose.msra.mxu0 0.0
        %745 = vmatprep.subr.mxu0 0.0
        %746 = vmatpush1.xpose.msra.mxu0 0.0
        %747 = vmatprep.subr.mxu0 0.0
        %748 = vmatpush1.xpose.msra.mxu0 0.0
        %749 = vmatprep.subr.mxu0 0.0
        %750 = vmatpush1.xpose.msra.mxu0 0.0
        %751 = vmatprep.subr.mxu0 0.0
        %752 = vmatpush1.xpose.msra.mxu0 0.0
        %753 = vmatprep.subr.mxu0 0.0
        %754 = vmatpush1.xpose.msra.mxu0 0.0
        %755 = vmatprep.subr.mxu0 0.0
        %756 = vmatpush1.xpose.msra.mxu0 0.0
        %757 = vmatprep.subr.mxu0 0.0
        %758 = vmatpush1.xpose.msra.mxu0 0.0
        %759 = vmatprep.subr.mxu0 0.0
        %760 = vmatpush1.xpose.msra.mxu0 0.0
        %761 = vmatprep.subr.mxu0 0.0
        %762 = vmatpush1.xpose.msra.mxu0 0.0
        %763 = vmatprep.subr.mxu0 0.0
        %764 = vmatpush1.xpose.msra.mxu0 0.0
        %765 = vmatprep.subr.mxu0 0.0
        %766 = vmatpush1.xpose.msra.mxu0 0.0
        %767 = vmatprep.subr.mxu0 0.0
        %768 = vmatpush1.xpose.msra.mxu0 0.0
        %769 = vmatprep.subr.mxu0 0.0
        %770 = vmatpush1.xpose.msra.mxu0 0.0
        %771 = vmatprep.subr.mxu0 0.0
        %772 = vmatpush1.xpose.msra.mxu0 0.0
        %773 = vmatprep.subr.mxu0 0.0
        %774 = vmatpush1.xpose.msra.mxu0 0.0
        %775 = vmatprep.subr.mxu0 0.0
        %776 = vmatpush1.xpose.msra.mxu0 0.0
        %777 = vmatprep.subr.mxu0 0.0
        %778 = vmatpush1.xpose.msra.mxu0 0.0
        %779 = vmatprep.subr.mxu0 0.0
        %780 = vmatpush1.xpose.msra.mxu0 0.0
        %781 = vmatprep.subr.mxu0 0.0
        %782 = vmatpush1.xpose.msra.mxu0 0.0
        %783 = vmatprep.subr.mxu0 0.0
        %784 = vmatpush1.xpose.msra.mxu0 0.0
        %785 = vmatprep.subr.mxu0 0.0
        %786 = vmatpush1.xpose.msra.mxu0 0.0
        %787 = vmatprep.subr.mxu0 0.0
        %788 = vmatpush1.xpose.msra.mxu0 0.0
        %789 = vmatprep.subr.mxu0 0.0
        %790 = vmatpush1.xpose.msra.mxu0 0.0
        %791 = vmatprep.subr.mxu0 0.0
        %792 = vmatpush1.xpose.msra.mxu0 0.0
        %793 = vmatprep.subr.mxu0 0.0
        %794 = vmatpush1.xpose.msra.mxu0 0.0
        %795 = vmatprep.subr.mxu0 0.0
        %796 = vmatpush1.xpose.msra.mxu0 0.0
        %797 = vmatprep.mubr.f32.mxu0 0.0
        %798 = vmatmul.mubr.f32.gmra.mrb[0].mxu0 %v729
        %v799 = vpop.f32.mrb[0].mxu0
        %v800 = vadd.f32 0.0, %v799
        %v801 = vpop.f32.mrb[0].mxu0
        %802 = vdwg.mxu0
        %v803 = vsel %vm500, %v572, -inf
        %804 = vmax.xlane.f32.xlu0 %v803
        %v805 = vpop.xlane.xlu0 %804
        %v806 = vsel %vm500, %v648, -inf
        %807 = vmax.xlane.f32.xlu0 %v806
        %v808 = vpop.xlane.xlu0 %807
        %v809 = vsel %vm500, %v724, -inf
        %810 = vmax.xlane.f32.xlu0 %v809
        %v811 = vpop.xlane.xlu0 %810
        %v812 = vsel %vm500, %v800, -inf
        %813 = vmax.xlane.f32.xlu0 %v812
        %v814 = vpop.xlane.xlu0 %813
        %v815 = vsub.f32 %v572, %v805
        %v816 = vsub.f32 %v648, %v808
        %v817 = vsub.f32 %v724, %v811
        %v818 = vsub.f32 %v800, %v814
        %v819 = vmul.f32 %v815, 1.442695
        %v820 = vpow.pop %v819
        %v821 = vmul.f32 %v816, 1.442695
        %v822 = vpow.pop %v821
        %v823 = vmul.f32 %v817, 1.442695
        %v824 = vpow.pop %v823
        %v825 = vmul.f32 %v818, 1.442695
        %v826 = vpow.pop %v825
        %v827 = vsel %vm500, %v820, 0.0
        %828 = vadd.xlane.f32.xlu0 %v827
        %v829 = vpop.xlane.xlu0 %828
        %v830 = vsel %vm500, %v822, 0.0
        %831 = vadd.xlane.f32.xlu0 %v830
        %v832 = vpop.xlane.xlu0 %831
        %v833 = vsel %vm500, %v824, 0.0
        %834 = vadd.xlane.f32.xlu0 %v833
        %v835 = vpop.xlane.xlu0 %834
        %v836 = vsel %vm500, %v826, 0.0
        %837 = vadd.xlane.f32.xlu0 %v836
        %v838 = vpop.xlane.xlu0 %837
        %v839 = vrcp.pop %v829
        %v840 = vrcp.pop %v832
        %v841 = vrcp.pop %v835
        %v842 = vrcp.pop %v838
        %v843 = vmul.f32 %v820, %v839
        %v844 = vmul.f32 %v822, %v840
        %v845 = vmul.f32 %v824, %v841
        %v846 = vmul.f32 %v826, %v842
        %847 = vrot.lane.b32.xlu0 %v488, 64
        %v848 = vpop.permute.xlu0 %847
        %v851 = vsel %vm500, %v843, 0
        %853 = vmatprep.subr.mxu0 0.0
        %854 = vmatpush1.msra.mxu0 %v848
        %855 = vmatprep.subr.mxu0 0.0
        %856 = vmatpush1.msra.mxu0 0.0
        %857 = vmatprep.subr.mxu0 0.0
        %858 = vmatpush1.msra.mxu0 0.0
        %859 = vmatprep.subr.mxu0 0.0
        %860 = vmatpush1.msra.mxu0 0.0
        %861 = vmatprep.subr.mxu0 0.0
        %862 = vmatpush1.msra.mxu0 0.0
        %863 = vmatprep.subr.mxu0 0.0
        %864 = vmatpush1.msra.mxu0 0.0
        %865 = vmatprep.subr.mxu0 0.0
        %866 = vmatpush1.msra.mxu0 0.0
        %867 = vmatprep.subr.mxu0 0.0
        %868 = vmatpush1.msra.mxu0 0.0
        %869 = vmatprep.subr.mxu0 0.0
        %870 = vmatpush1.msra.mxu0 0.0
        %871 = vmatprep.subr.mxu0 0.0
        %872 = vmatpush1.msra.mxu0 0.0
        %873 = vmatprep.subr.mxu0 0.0
        %874 = vmatpush1.msra.mxu0 0.0
        %875 = vmatprep.subr.mxu0 0.0
        %876 = vmatpush1.msra.mxu0 0.0
        %877 = vmatprep.subr.mxu0 0.0
        %878 = vmatpush1.msra.mxu0 0.0
        %879 = vmatprep.subr.mxu0 0.0
        %880 = vmatpush1.msra.mxu0 0.0
        %881 = vmatprep.subr.mxu0 0.0
        %882 = vmatpush1.msra.mxu0 0.0
        %883 = vmatprep.subr.mxu0 0.0
        %884 = vmatpush1.msra.mxu0 0.0
        %885 = vmatprep.subr.mxu0 0.0
        %886 = vmatpush1.msra.mxu0 0.0
        %887 = vmatprep.subr.mxu0 0.0
        %888 = vmatpush1.msra.mxu0 0.0
        %889 = vmatprep.subr.mxu0 0.0
        %890 = vmatpush1.msra.mxu0 0.0
        %891 = vmatprep.subr.mxu0 0.0
        %892 = vmatpush1.msra.mxu0 0.0
        %893 = vmatprep.subr.mxu0 0.0
        %894 = vmatpush1.msra.mxu0 0.0
        %895 = vmatprep.subr.mxu0 0.0
        %896 = vmatpush1.msra.mxu0 0.0
        %897 = vmatprep.subr.mxu0 0.0
        %898 = vmatpush1.msra.mxu0 0.0
        %899 = vmatprep.subr.mxu0 0.0
        %900 = vmatpush1.msra.mxu0 0.0
        %901 = vmatprep.subr.mxu0 0.0
        %902 = vmatpush1.msra.mxu0 0.0
        %903 = vmatprep.subr.mxu0 0.0
        %904 = vmatpush1.msra.mxu0 0.0
        %905 = vmatprep.subr.mxu0 0.0
        %906 = vmatpush1.msra.mxu0 0.0
        %907 = vmatprep.subr.mxu0 0.0
        %908 = vmatpush1.msra.mxu0 0.0
        %909 = vmatprep.subr.mxu0 0.0
        %910 = vmatpush1.msra.mxu0 0.0
        %911 = vmatprep.subr.mxu0 0.0
        %912 = vmatpush1.msra.mxu0 0.0
        %913 = vmatprep.subr.mxu0 0.0
        %914 = vmatpush1.msra.mxu0 0.0
        %915 = vmatprep.subr.mxu0 0.0
        %916 = vmatpush1.msra.mxu0 0.0
        %917 = vmatprep.mubr.f32.mxu0 0.0
        %918 = vmatmul.mubr.f32.gmra.mrb[0].mxu0 %v851
        %v919 = vpop.f32.mrb[0].mxu0
        %v920 = vadd.f32 0.0, %v919
        %v921 = vpop.f32.mrb[0].mxu0
        %922 = vdwg.mxu0
        %923 = vrot.lane.b32.xlu0 %v493, 64
        %v924 = vpop.permute.xlu0 %923
        %v927 = vsel %vm500, %v844, 0
        %929 = vmatprep.subr.mxu0 0.0
        %930 = vmatpush1.msra.mxu0 %v924
        %931 = vmatprep.subr.mxu0 0.0
        %932 = vmatpush1.msra.mxu0 0.0
        %933 = vmatprep.subr.mxu0 0.0
        %934 = vmatpush1.msra.mxu0 0.0
        %935 = vmatprep.subr.mxu0 0.0
        %936 = vmatpush1.msra.mxu0 0.0
        %937 = vmatprep.subr.mxu0 0.0
        %938 = vmatpush1.msra.mxu0 0.0
        %939 = vmatprep.subr.mxu0 0.0
        %940 = vmatpush1.msra.mxu0 0.0
        %941 = vmatprep.subr.mxu0 0.0
        %942 = vmatpush1.msra.mxu0 0.0
        %943 = vmatprep.subr.mxu0 0.0
        %944 = vmatpush1.msra.mxu0 0.0
        %945 = vmatprep.subr.mxu0 0.0
        %946 = vmatpush1.msra.mxu0 0.0
        %947 = vmatprep.subr.mxu0 0.0
        %948 = vmatpush1.msra.mxu0 0.0
        %949 = vmatprep.subr.mxu0 0.0
        %950 = vmatpush1.msra.mxu0 0.0
        %951 = vmatprep.subr.mxu0 0.0
        %952 = vmatpush1.msra.mxu0 0.0
        %953 = vmatprep.subr.mxu0 0.0
        %954 = vmatpush1.msra.mxu0 0.0
        %955 = vmatprep.subr.mxu0 0.0
        %956 = vmatpush1.msra.mxu0 0.0
        %957 = vmatprep.subr.mxu0 0.0
        %958 = vmatpush1.msra.mxu0 0.0
        %959 = vmatprep.subr.mxu0 0.0
        %960 = vmatpush1.msra.mxu0 0.0
        %961 = vmatprep.subr.mxu0 0.0
        %962 = vmatpush1.msra.mxu0 0.0
        %963 = vmatprep.subr.mxu0 0.0
        %964 = vmatpush1.msra.mxu0 0.0
        %965 = vmatprep.subr.mxu0 0.0
        %966 = vmatpush1.msra.mxu0 0.0
        %967 = vmatprep.subr.mxu0 0.0
        %968 = vmatpush1.msra.mxu0 0.0
        %969 = vmatprep.subr.mxu0 0.0
        %970 = vmatpush1.msra.mxu0 0.0
        %971 = vmatprep.subr.mxu0 0.0
        %972 = vmatpush1.msra.mxu0 0.0
        %973 = vmatprep.subr.mxu0 0.0
        %974 = vmatpush1.msra.mxu0 0.0
        %975 = vmatprep.subr.mxu0 0.0
        %976 = vmatpush1.msra.mxu0 0.0
        %977 = vmatprep.subr.mxu0 0.0
        %978 = vmatpush1.msra.mxu0 0.0
        %979 = vmatprep.subr.mxu0 0.0
        %980 = vmatpush1.msra.mxu0 0.0
        %981 = vmatprep.subr.mxu0 0.0
        %982 = vmatpush1.msra.mxu0 0.0
        %983 = vmatprep.subr.mxu0 0.0
        %984 = vmatpush1.msra.mxu0 0.0
        %985 = vmatprep.subr.mxu0 0.0
        %986 = vmatpush1.msra.mxu0 0.0
        %987 = vmatprep.subr.mxu0 0.0
        %988 = vmatpush1.msra.mxu0 0.0
        %989 = vmatprep.subr.mxu0 0.0
        %990 = vmatpush1.msra.mxu0 0.0
        %991 = vmatprep.subr.mxu0 0.0
        %992 = vmatpush1.msra.mxu0 0.0
        %993 = vmatprep.mubr.f32.mxu0 0.0
        %994 = vmatmul.mubr.f32.gmra.mrb[0].mxu0 %v927
        %v995 = vpop.f32.mrb[0].mxu0
        %v996 = vadd.f32 0.0, %v995
        %v997 = vpop.f32.mrb[0].mxu0
        %998 = vdwg.mxu0
        %999 = vrot.lane.b32.xlu0 %v495, 64
        %v1000 = vpop.permute.xlu0 %999
        %v1003 = vsel %vm500, %v845, 0
        %1005 = vmatprep.subr.mxu0 0.0
        %1006 = vmatpush1.msra.mxu0 %v1000
        %1007 = vmatprep.subr.mxu0 0.0
        %1008 = vmatpush1.msra.mxu0 0.0
        %1009 = vmatprep.subr.mxu0 0.0
        %1010 = vmatpush1.msra.mxu0 0.0
        %1011 = vmatprep.subr.mxu0 0.0
        %1012 = vmatpush1.msra.mxu0 0.0
        %1013 = vmatprep.subr.mxu0 0.0
        %1014 = vmatpush1.msra.mxu0 0.0
        %1015 = vmatprep.subr.mxu0 0.0
        %1016 = vmatpush1.msra.mxu0 0.0
        %1017 = vmatprep.subr.mxu0 0.0
        %1018 = vmatpush1.msra.mxu0 0.0
        %1019 = vmatprep.subr.mxu0 0.0
        %1020 = vmatpush1.msra.mxu0 0.0
        %1021 = vmatprep.subr.mxu0 0.0
        %1022 = vmatpush1.msra.mxu0 0.0
        %1023 = vmatprep.subr.mxu0 0.0
        %1024 = vmatpush1.msra.mxu0 0.0
        %1025 = vmatprep.subr.mxu0 0.0
        %1026 = vmatpush1.msra.mxu0 0.0
        %1027 = vmatprep.subr.mxu0 0.0
        %1028 = vmatpush1.msra.mxu0 0.0
        %1029 = vmatprep.subr.mxu0 0.0
        %1030 = vmatpush1.msra.mxu0 0.0
        %1031 = vmatprep.subr.mxu0 0.0
        %1032 = vmatpush1.msra.mxu0 0.0
        %1033 = vmatprep.subr.mxu0 0.0
        %1034 = vmatpush1.msra.mxu0 0.0
        %1035 = vmatprep.subr.mxu0 0.0
        %1036 = vmatpush1.msra.mxu0 0.0
        %1037 = vmatprep.subr.mxu0 0.0
        %1038 = vmatpush1.msra.mxu0 0.0
        %1039 = vmatprep.subr.mxu0 0.0
        %1040 = vmatpush1.msra.mxu0 0.0
        %1041 = vmatprep.subr.mxu0 0.0
        %1042 = vmatpush1.msra.mxu0 0.0
        %1043 = vmatprep.subr.mxu0 0.0
        %1044 = vmatpush1.msra.mxu0 0.0
        %1045 = vmatprep.subr.mxu0 0.0
        %1046 = vmatpush1.msra.mxu0 0.0
        %1047 = vmatprep.subr.mxu0 0.0
        %1048 = vmatpush1.msra.mxu0 0.0
        %1049 = vmatprep.subr.mxu0 0.0
        %1050 = vmatpush1.msra.mxu0 0.0
        %1051 = vmatprep.subr.mxu0 0.0
        %1052 = vmatpush1.msra.mxu0 0.0
        %1053 = vmatprep.subr.mxu0 0.0
        %1054 = vmatpush1.msra.mxu0 0.0
        %1055 = vmatprep.subr.mxu0 0.0
        %1056 = vmatpush1.msra.mxu0 0.0
        %1057 = vmatprep.subr.mxu0 0.0
        %1058 = vmatpush1.msra.mxu0 0.0
        %1059 = vmatprep.subr.mxu0 0.0
        %1060 = vmatpush1.msra.mxu0 0.0
        %1061 = vmatprep.subr.mxu0 0.0
        %1062 = vmatpush1.msra.mxu0 0.0
        %1063 = vmatprep.subr.mxu0 0.0
        %1064 = vmatpush1.msra.mxu0 0.0
        %1065 = vmatprep.subr.mxu0 0.0
        %1066 = vmatpush1.msra.mxu0 0.0
        %1067 = vmatprep.subr.mxu0 0.0
        %1068 = vmatpush1.msra.mxu0 0.0
        %1069 = vmatprep.mubr.f32.mxu0 0.0
        %1070 = vmatmul.mubr.f32.gmra.mrb[0].mxu0 %v1003
        %v1071 = vpop.f32.mrb[0].mxu0
        %v1072 = vadd.f32 0.0, %v1071
        %v1073 = vpop.f32.mrb[0].mxu0
        %1074 = vdwg.mxu0
        %1075 = vrot.lane.b32.xlu0 %v497, 64
        %v1076 = vpop.permute.xlu0 %1075
        %v1079 = vsel %vm500, %v846, 0
        %1081 = vmatprep.subr.mxu0 0.0
        %1082 = vmatpush1.msra.mxu0 %v1076
        %1083 = vmatprep.subr.mxu0 0.0
        %1084 = vmatpush1.msra.mxu0 0.0
        %1085 = vmatprep.subr.mxu0 0.0
        %1086 = vmatpush1.msra.mxu0 0.0
        %1087 = vmatprep.subr.mxu0 0.0
        %1088 = vmatpush1.msra.mxu0 0.0
        %1089 = vmatprep.subr.mxu0 0.0
        %1090 = vmatpush1.msra.mxu0 0.0
        %1091 = vmatprep.subr.mxu0 0.0
        %1092 = vmatpush1.msra.mxu0 0.0
        %1093 = vmatprep.subr.mxu0 0.0
        %1094 = vmatpush1.msra.mxu0 0.0
        %1095 = vmatprep.subr.mxu0 0.0
        %1096 = vmatpush1.msra.mxu0 0.0
        %1097 = vmatprep.subr.mxu0 0.0
        %1098 = vmatpush1.msra.mxu0 0.0
        %1099 = vmatprep.subr.mxu0 0.0
        %1100 = vmatpush1.msra.mxu0 0.0
        %1101 = vmatprep.subr.mxu0 0.0
        %1102 = vmatpush1.msra.mxu0 0.0
        %1103 = vmatprep.subr.mxu0 0.0
        %1104 = vmatpush1.msra.mxu0 0.0
        %1105 = vmatprep.subr.mxu0 0.0
        %1106 = vmatpush1.msra.mxu0 0.0
        %1107 = vmatprep.subr.mxu0 0.0
        %1108 = vmatpush1.msra.mxu0 0.0
        %1109 = vmatprep.subr.mxu0 0.0
        %1110 = vmatpush1.msra.mxu0 0.0
        %1111 = vmatprep.subr.mxu0 0.0
        %1112 = vmatpush1.msra.mxu0 0.0
        %1113 = vmatprep.subr.mxu0 0.0
        %1114 = vmatpush1.msra.mxu0 0.0
        %1115 = vmatprep.subr.mxu0 0.0
        %1116 = vmatpush1.msra.mxu0 0.0
        %1117 = vmatprep.subr.mxu0 0.0
        %1118 = vmatpush1.msra.mxu0 0.0
        %1119 = vmatprep.subr.mxu0 0.0
        %1120 = vmatpush1.msra.mxu0 0.0
        %1121 = vmatprep.subr.mxu0 0.0
        %1122 = vmatpush1.msra.mxu0 0.0
        %1123 = vmatprep.subr.mxu0 0.0
        %1124 = vmatpush1.msra.mxu0 0.0
        %1125 = vmatprep.subr.mxu0 0.0
        %1126 = vmatpush1.msra.mxu0 0.0
        %1127 = vmatprep.subr.mxu0 0.0
        %1128 = vmatpush1.msra.mxu0 0.0
        %1129 = vmatprep.subr.mxu0 0.0
        %1130 = vmatpush1.msra.mxu0 0.0
        %1131 = vmatprep.subr.mxu0 0.0
        %1132 = vmatpush1.msra.mxu0 0.0
        %1133 = vmatprep.subr.mxu0 0.0
        %1134 = vmatpush1.msra.mxu0 0.0
        %1135 = vmatprep.subr.mxu0 0.0
        %1136 = vmatpush1.msra.mxu0 0.0
        %1137 = vmatprep.subr.mxu0 0.0
        %1138 = vmatpush1.msra.mxu0 0.0
        %1139 = vmatprep.subr.mxu0 0.0
        %1140 = vmatpush1.msra.mxu0 0.0
        %1141 = vmatprep.subr.mxu0 0.0
        %1142 = vmatpush1.msra.mxu0 0.0
        %1143 = vmatprep.subr.mxu0 0.0
        %1144 = vmatpush1.msra.mxu0 0.0
        %1145 = vmatprep.mubr.f32.mxu0 0.0
        %1146 = vmatmul.mubr.f32.gmra.mrb[0].mxu0 %v1079
        %v1147 = vpop.f32.mrb[0].mxu0
        %v1148 = vadd.f32 0.0, %v1147
        %v1149 = vpop.f32.mrb[0].mxu0
        %1150 = vdwg.mxu0
        %1152 = vrot.lane.b32.xlu0 %v996, 8
        %v1153 = vpop.permute.xlu0 %1152
        %1156 = vrot.lane.b32.xlu0 %v1072, 16
        %v1157 = vpop.permute.xlu0 %1156
        %1160 = vrot.lane.b32.xlu0 %v1148, 24
        %v1161 = vpop.permute.xlu0 %1160
        %v1163 = vsel %vm500, %v920, %v1153
        %vm1164 = vcmask 130048
        %v1165 = vsel %vm1164, %v1163, %v1157
        %vm1166 = vcmask 195584
        %v1167 = vsel %vm1166, %v1165, %v1161
        %v1168 = vld [vmem:[%s2] sm:$0xff]
        %v1169 = vld [vmem:[%s2 + $0x8] sm:$0xff]
        %v1170 = vld [vmem:[%s2 + $0x10] sm:$0xff]
        %v1171 = vld [vmem:[%s2 + $0x18] sm:$0xff]
        %v1173 = vsel %vm385, %v1167, 0
        %1175 = vmatprep.subr.mxu0 0.0
        %1176 = vmatpush1.msra.mxu0 %v1168
        %1177 = vmatprep.subr.mxu0 0.0
        %1178 = vmatpush1.msra.mxu0 %v1169
        %1179 = vmatprep.subr.mxu0 0.0
        %1180 = vmatpush1.msra.mxu0 %v1170
        %1181 = vmatprep.subr.mxu0 0.0
        %1182 = vmatpush1.msra.mxu0 %v1171
        %1183 = vmatprep.subr.mxu0 0.0
        %1184 = vmatpush1.msra.mxu0 0.0
        %1185 = vmatprep.subr.mxu0 0.0
        %1186 = vmatpush1.msra.mxu0 0.0
        %1187 = vmatprep.subr.mxu0 0.0
        %1188 = vmatpush1.msra.mxu0 0.0
        %1189 = vmatprep.subr.mxu0 0.0
        %1190 = vmatpush1.msra.mxu0 0.0
        %1191 = vmatprep.subr.mxu0 0.0
        %1192 = vmatpush1.msra.mxu0 0.0
        %1193 = vmatprep.subr.mxu0 0.0
        %1194 = vmatpush1.msra.mxu0 0.0
        %1195 = vmatprep.subr.mxu0 0.0
        %1196 = vmatpush1.msra.mxu0 0.0
        %1197 = vmatprep.subr.mxu0 0.0
        %1198 = vmatpush1.msra.mxu0 0.0
        %1199 = vmatprep.subr.mxu0 0.0
        %1200 = vmatpush1.msra.mxu0 0.0
        %1201 = vmatprep.subr.mxu0 0.0
        %1202 = vmatpush1.msra.mxu0 0.0
        %1203 = vmatprep.subr.mxu0 0.0
        %1204 = vmatpush1.msra.mxu0 0.0
        %1205 = vmatprep.subr.mxu0 0.0
        %1206 = vmatpush1.msra.mxu0 0.0
        %1207 = vmatprep.subr.mxu0 0.0
        %1208 = vmatpush1.msra.mxu0 0.0
        %1209 = vmatprep.subr.mxu0 0.0
        %1210 = vmatpush1.msra.mxu0 0.0
        %1211 = vmatprep.subr.mxu0 0.0
        %1212 = vmatpush1.msra.mxu0 0.0
        %1213 = vmatprep.subr.mxu0 0.0
        %1214 = vmatpush1.msra.mxu0 0.0
        %1215 = vmatprep.subr.mxu0 0.0
        %1216 = vmatpush1.msra.mxu0 0.0
        %1217 = vmatprep.subr.mxu0 0.0
        %1218 = vmatpush1.msra.mxu0 0.0
        %1219 = vmatprep.subr.mxu0 0.0
        %1220 = vmatpush1.msra.mxu0 0.0
        %1221 = vmatprep.subr.mxu0 0.0
        %1222 = vmatpush1.msra.mxu0 0.0
        %1223 = vmatprep.subr.mxu0 0.0
        %1224 = vmatpush1.msra.mxu0 0.0
        %1225 = vmatprep.subr.mxu0 0.0
        %1226 = vmatpush1.msra.mxu0 0.0
        %1227 = vmatprep.subr.mxu0 0.0
        %1228 = vmatpush1.msra.mxu0 0.0
        %1229 = vmatprep.subr.mxu0 0.0
        %1230 = vmatpush1.msra.mxu0 0.0
        %1231 = vmatprep.subr.mxu0 0.0
        %1232 = vmatpush1.msra.mxu0 0.0
        %1233 = vmatprep.subr.mxu0 0.0
        %1234 = vmatpush1.msra.mxu0 0.0
        %1235 = vmatprep.subr.mxu0 0.0
        %1236 = vmatpush1.msra.mxu0 0.0
        %1237 = vmatprep.subr.mxu0 0.0
        %1238 = vmatpush1.msra.mxu0 0.0
        %1239 = vmatprep.mubr.f32.mxu0 0.0
        %1240 = vmatmul.mubr.f32.gmra.mrb[0].mxu0 %v1173
        %v1241 = vpop.f32.mrb[0].mxu0
        %v1242 = vadd.f32 %v382, %v1241
        %v1243 = vpop.f32.mrb[0].mxu0
        %1244 = vdwg.mxu0
        %v1245 = vld [vmem:[%s5] sm:$0x1]
        %v1246 = vld [vmem:[%s6] sm:$0x1]
        %v1247 = vsel %vm385, %v1242, 0.0
        %1248 = vadd.xlane.f32.xlu0 %v1247
        %v1249 = vpop.xlane.xlu0 %1248
        %v1250 = vmul.f32 %v1249, %v389
        %v1251 = vsub.f32 %v1242, %v1250
        %v1252 = vmul.f32 %v1251, %v1251
        %v1253 = vsel %vm385, %v1252, 0.0
        %1254 = vadd.xlane.f32.xlu0 %v1253
        %v1255 = vpop.xlane.xlu0 %1254
        %v1256 = vmul.f32 %v1255, %v389
        %v1257 = vadd.f32 %v1256, 1e-05
        %v1258 = vrsqrt.pop %v1257
        %v1259 = vmul.f32 %v1251, %v1258
        %v1261 = vlaneseq
        %v1262 = vshrl.u32 %v1261, 7
        %v1263 = vsub.s32 0, %v1262
        %v1264 = vrot.slane %v1245, %v1263
        %v1266 = vmul.f32 %v1259, %v1264
        %v1268 = vlaneseq
        %v1269 = vshrl.u32 %v1268, 7
        %v1270 = vsub.s32 0, %v1269
        %v1271 = vrot.slane %v1246, %v1270
        %v1273 = vadd.f32 %v1266, %v1271
        %v1274 = vld [vmem:[%s7] sm:$0xff]
        %v1275 = vld [vmem:[%s7 + $0x8] sm:$0xff]
        %v1276 = vld [vmem:[%s7 + $0x10] sm:$0xff]
        %v1277 = vld [vmem:[%s7 + $0x18] sm:$0xff]
        %v1278 = vld [vmem:[%s8] sm:$0x1]
        %v1280 = vlaneseq
        %v1281 = vshrl.u32 %v1280, 7
        %v1282 = vsub.s32 0, %v1281
        %v1283 = vrot.slane %v1278, %v1282
        %v1286 = vsel %vm385, %v1273, 0
        %1288 = vmatprep.subr.mxu0 0.0
        %1289 = vmatpush1.msra.mxu0 %v1274
        %1290 = vmatprep.subr.mxu0 0.0
        %1291 = vmatpush1.msra.mxu0 %v1275
        %1292 = vmatprep.subr.mxu0 0.0
        %1293 = vmatpush1.msra.mxu0 %v1276
        %1294 = vmatprep.subr.mxu0 0.0
        %1295 = vmatpush1.msra.mxu0 %v1277
        %1296 = vmatprep.subr.mxu0 0.0
        %1297 = vmatpush1.msra.mxu0 0.0
        %1298 = vmatprep.subr.mxu0 0.0
        %1299 = vmatpush1.msra.mxu0 0.0
        %1300 = vmatprep.subr.mxu0 0.0
        %1301 = vmatpush1.msra.mxu0 0.0
        %1302 = vmatprep.subr.mxu0 0.0
        %1303 = vmatpush1.msra.mxu0 0.0
        %1304 = vmatprep.subr.mxu0 0.0
        %1305 = vmatpush1.msra.mxu0 0.0
        %1306 = vmatprep.subr.mxu0 0.0
        %1307 = vmatpush1.msra.mxu0 0.0
        %1308 = vmatprep.subr.mxu0 0.0
        %1309 = vmatpush1.msra.mxu0 0.0
        %1310 = vmatprep.subr.mxu0 0.0
        %1311 = vmatpush1.msra.mxu0 0.0
        %1312 = vmatprep.subr.mxu0 0.0
        %1313 = vmatpush1.msra.mxu0 0.0
        %1314 = vmatprep.subr.mxu0 0.0
        %1315 = vmatpush1.msra.mxu0 0.0
        %1316 = vmatprep.subr.mxu0 0.0
        %1317 = vmatpush1.msra.mxu0 0.0
        %1318 = vmatprep.subr.mxu0 0.0
        %1319 = vmatpush1.msra.mxu0 0.0
        %1320 = vmatprep.subr.mxu0 0.0
        %1321 = vmatpush1.msra.mxu0 0.0
        %1322 = vmatprep.subr.mxu0 0.0
        %1323 = vmatpush1.msra.mxu0 0.0
        %1324 = vmatprep.subr.mxu0 0.0
        %1325 = vmatpush1.msra.mxu0 0.0
        %1326 = vmatprep.subr.mxu0 0.0
        %1327 = vmatpush1.msra.mxu0 0.0
        %1328 = vmatprep.subr.mxu0 0.0
        %1329 = vmatpush1.msra.mxu0 0.0
        %1330 = vmatprep.subr.mxu0 0.0
        %1331 = vmatpush1.msra.mxu0 0.0
        %1332 = vmatprep.subr.mxu0 0.0
        %1333 = vmatpush1.msra.mxu0 0.0
        %1334 = vmatprep.subr.mxu0 0.0
        %1335 = vmatpush1.msra.mxu0 0.0
        %1336 = vmatprep.subr.mxu0 0.0
        %1337 = vmatpush1.msra.mxu0 0.0
        %1338 = vmatprep.subr.mxu0 0.0
        %1339 = vmatpush1.msra.mxu0 0.0
        %1340 = vmatprep.subr.mxu0 0.0
        %1341 = vmatpush1.msra.mxu0 0.0
        %1342 = vmatprep.subr.mxu0 0.0
        %1343 = vmatpush1.msra.mxu0 0.0
        %1344 = vmatprep.subr.mxu0 0.0
        %1345 = vmatpush1.msra.mxu0 0.0
        %1346 = vmatprep.subr.mxu0 0.0
        %1347 = vmatpush1.msra.mxu0 0.0
        %1348 = vmatprep.subr.mxu0 0.0
        %1349 = vmatpush1.msra.mxu0 0.0
        %1350 = vmatprep.subr.mxu0 0.0
        %1351 = vmatpush1.msra.mxu0 0.0
        %1352 = vmatprep.mubr.f32.mxu0 0.0
        %1353 = vmatmul.mubr.f32.gmra.mrb[0].mxu0 %v1286
        %v1354 = vpop.f32.mrb[0].mxu0
        %v1355 = vadd.f32 %v1283, %v1354
        %v1356 = vpop.f32.mrb[0].mxu0
        %1357 = vdwg.mxu0
        %v1358 = vmul.f32 %v1355, 0.5
        %v1359 = vmul.f32 %v1355, 0.70710677
        %v1360 = vand.u32 2147483647, %v1359
        %v1361 = vmul.f32 %v1360, 0.3275911
        %v1362 = vadd.f32 %v1361, 1.0
        %v1363 = vrcp.pop %v1362
        %v1364 = vmul.f32 %v1363, 1.0614054
        %v1365 = vadd.f32 %v1364, -1.4531521
        %v1366 = vmul.f32 %v1365, %v1363
        %v1367 = vadd.f32 %v1366, 1.4214138
        %v1368 = vmul.f32 %v1367, %v1363
        %v1369 = vadd.f32 %v1368, -0.28449672
        %v1370 = vmul.f32 %v1369, %v1363
        %v1371 = vadd.f32 %v1370, 0.2548296
        %v1372 = vmul.f32 %v1371, %v1363
        %v1373 = vsub.f32 0.0, %v1360
        %v1374 = vmul.f32 %v1373, %v1360
        %v1375 = vmul.f32 %v1374, 1.442695
        %v1376 = vpow.pop %v1375
        %v1377 = vmul.f32 %v1372, %v1376
        %v1378 = vsub.f32 1.0, %v1377
        %vm1379 = vcmp.ge.f32.partialorder %v1359, 0.0
        %v1380 = vsub.f32 0.0, %v1378
        %v1381 = vsel %vm1379, %v1378, %v1380
        %v1382 = vadd.f32 %v1381, 1.0
        %v1383 = vmul.f32 %v1358, %v1382
        %v1384 = vld [vmem:[%s9] sm:$0xff]
        %v1385 = vld [vmem:[%s9 + $0x8] sm:$0xff]
        %v1386 = vld [vmem:[%s9 + $0x10] sm:$0xff]
        %v1387 = vld [vmem:[%s9 + $0x18] sm:$0xff]
        %v1388 = vld [vmem:[%s9 + $0x20] sm:$0xff]
        %v1389 = vld [vmem:[%s9 + $0x28] sm:$0xff]
        %v1390 = vld [vmem:[%s9 + $0x30] sm:$0xff]
        %v1391 = vld [vmem:[%s9 + $0x38] sm:$0xff]
        %v1392 = vld [vmem:[%s10] sm:$0x1]
        %v1394 = vlaneseq
        %v1395 = vshrl.u32 %v1394, 7
        %v1396 = vsub.s32 0, %v1395
        %v1397 = vrot.slane %v1392, %v1396
        %vm1399 = vcmask 523264
        %v1401 = vsel %vm1399, %v1383, 0
        %1403 = vmatprep.subr.mxu0 0.0
        %1404 = vmatpush1.msra.mxu0 %v1384
        %1405 = vmatprep.subr.mxu0 0.0
        %1406 = vmatpush1.msra.mxu0 %v1385
        %1407 = vmatprep.subr.mxu0 0.0
        %1408 = vmatpush1.msra.mxu0 %v1386
        %1409 = vmatprep.subr.mxu0 0.0
        %1410 = vmatpush1.msra.mxu0 %v1387
        %1411 = vmatprep.subr.mxu0 0.0
        %1412 = vmatpush1.msra.mxu0 %v1388
        %1413 = vmatprep.subr.mxu0 0.0
        %1414 = vmatpush1.msra.mxu0 %v1389
        %1415 = vmatprep.subr.mxu0 0.0
        %1416 = vmatpush1.msra.mxu0 %v1390
        %1417 = vmatprep.subr.mxu0 0.0
        %1418 = vmatpush1.msra.mxu0 %v1391
        %1419 = vmatprep.subr.mxu0 0.0
        %1420 = vmatpush1.msra.mxu0 0.0
        %1421 = vmatprep.subr.mxu0 0.0
        %1422 = vmatpush1.msra.mxu0 0.0
        %1423 = vmatprep.subr.mxu0 0.0
        %1424 = vmatpush1.msra.mxu0 0.0
        %1425 = vmatprep.subr.mxu0 0.0
        %1426 = vmatpush1.msra.mxu0 0.0
        %1427 = vmatprep.subr.mxu0 0.0
        %1428 = vmatpush1.msra.mxu0 0.0
        %1429 = vmatprep.subr.mxu0 0.0
        %1430 = vmatpush1.msra.mxu0 0.0
        %1431 = vmatprep.subr.mxu0 0.0
        %1432 = vmatpush1.msra.mxu0 0.0
        %1433 = vmatprep.subr.mxu0 0.0
        %1434 = vmatpush1.msra.mxu0 0.0
        %1435 = vmatprep.subr.mxu0 0.0
        %1436 = vmatpush1.msra.mxu0 0.0
        %1437 = vmatprep.subr.mxu0 0.0
        %1438 = vmatpush1.msra.mxu0 0.0
        %1439 = vmatprep.subr.mxu0 0.0
        %1440 = vmatpush1.msra.mxu0 0.0
        %1441 = vmatprep.subr.mxu0 0.0
        %1442 = vmatpush1.msra.mxu0 0.0
        %1443 = vmatprep.subr.mxu0 0.0
        %1444 = vmatpush1.msra.mxu0 0.0
        %1445 = vmatprep.subr.mxu0 0.0
        %1446 = vmatpush1.msra.mxu0 0.0
        %1447 = vmatprep.subr.mxu0 0.0
        %1448 = vmatpush1.msra.mxu0 0.0
        %1449 = vmatprep.subr.mxu0 0.0
        %1450 = vmatpush1.msra.mxu0 0.0
        %1451 = vmatprep.subr.mxu0 0.0
        %1452 = vmatpush1.msra.mxu0 0.0
        %1453 = vmatprep.subr.mxu0 0.0
        %1454 = vmatpush1.msra.mxu0 0.0
        %1455 = vmatprep.subr.mxu0 0.0
        %1456 = vmatpush1.msra.mxu0 0.0
        %1457 = vmatprep.subr.mxu0 0.0
        %1458 = vmatpush1.msra.mxu0 0.0
        %1459 = vmatprep.subr.mxu0 0.0
        %1460 = vmatpush1.msra.mxu0 0.0
        %1461 = vmatprep.subr.mxu0 0.0
        %1462 = vmatpush1.msra.mxu0 0.0
        %1463 = vmatprep.subr.mxu0 0.0
        %1464 = vmatpush1.msra.mxu0 0.0
        %1465 = vmatprep.subr.mxu0 0.0
        %1466 = vmatpush1.msra.mxu0 0.0
        %1467 = vmatprep.mubr.f32.mxu0 0.0
        %1468 = vmatmul.mubr.f32.gmra.mrb[0].mxu0 %v1401
        %v1469 = vpop.f32.mrb[0].mxu0
        %v1470 = vadd.f32 %v1397, %v1469
        %v1471 = vpop.f32.mrb[0].mxu0
        %1472 = vdwg.mxu0
        %v1473 = vadd.f32 %v1470, %v1242
        %1474 = vst.msk [vmem:[%s377] sm:$0xff] %vm385, %v1473
        %s1475 = sand.u32 %s269, 1
        %s1476 = scalar_lea.sflag [#allocation3], %s1475
        %s1477 = sand.u32 %s269, 1
        %s1478 = smul.addr %s1477, 8
        %s1479 = scalar_lea.vmem [#allocation2], %s1478
        // Predicated region
        $region65: #{self_encoder_block.1} parent=63 // pred_check
          %p1480 = pneg %p279
        $region66: #{self_encoder_block.1} parent=63 // pred_check_branch
          %1482 = sbr.rel (%p1480) target = $region68
        $region67: #{self_encoder_block.1} parent=63 // pred_region
          %s1484 = ssub.s32 128, 128
          %1485 = vsyncadd %s1476, %s1484
          %s1486 = smul.addr %s25, 128
          %s1487 = scalar_lea.hbm %s11, %s1486
          %s1489 = sshll.u32 %s1479, 4
          %s1490 = int_to_ptr.vmem [resolvable:$true] %s1489
          %1492 = dma.vmem_to_hbm [thread:$0]  %s1490, 128, %s1487, %s1476
        $region68: #{self_encoder_block.1} parent=63 // pred_fallthru
          _
      $region64: #{self_encoder_block.1} parent=5 // pred_fallthru
        _
      %p1493 = scmp.le.s32.totalorder 2, %s20
      // Predicated region
      $region69: #{self_encoder_block.1} parent=5 // pred_check
        %p1494 = pneg %p1493
      $region70: #{self_encoder_block.1} parent=5 // pred_check_branch
        %1496 = sbr.rel (%p1494) target = $region72
      $region71: #{self_encoder_block.1} parent=5 // pred_region
        %s1497 = ssub.s32 %s20, 2
        // Predicated region
        $region73: #{self_encoder_block.1} parent=71 // pred_check
          %p1498 = pneg %p285
        $region74: #{self_encoder_block.1} parent=71 // pred_check_branch
          %1500 = sbr.rel (%p1498) target = $region76
        $region75: #{self_encoder_block.1} parent=71 // pred_region
          %s1501 = sand.u32 %s270, 1
          %s1502 = scalar_lea.sflag [#allocation3], %s1501
          %s1503 = sand.u32 %s270, 1
          %s1504 = smul.addr %s1503, 8
          %s1505 = scalar_lea.vmem [#allocation2], %s1504
          %1506 = dma.done %s1502, 128
        $region76: #{self_encoder_block.1} parent=71 // pred_fallthru
          _
      $region72: #{self_encoder_block.1} parent=5 // pred_fallthru
        _
    $region6: #{self_encoder_block.1} parent=1 // loop_footer
      %s24 = sadd.s32 1, %s20
    $region7: #{self_encoder_block.1} parent=1 // loop_footer_branch
      %19 = sbr.rel target = $region3
    $region8: #{self_encoder_block.1} parent=1 // loop_exit
      _
    %1507 = vsyncpa [#allocation3], 1
    %s1508 = scalar_lea.sflag [#allocation3], 1
    %1509 = vsyncpa %s1508, 1

</llo_original>
